<compile_context>
chip_gen: v7x
topology: tpu7x:2x2x1
jax: 0.10.0
libtpu: 0.0.40
codegen_flags: <defaults>
</compile_context>

<pallas_src>
import jax
import jax.numpy as jnp
from jax.experimental import pallas as pl
from jax.experimental.pallas import tpu as pltpu


class config:
    hidden_dim = 32
    emb_dim = 32
    vocab_size = 124          # extended vocab = 124 + 4 extra = 128 (lane-dense)
    is_coverage = True
    pointer_gen = True
    trunc_norm_init_std = 1e-4
    rand_unif_init_mag = 0.02


_TARGET_B_TILE = 128          # rows per grid step on real batches (256 on v6e/v7x)
_LANE = 128
_NEG_INF = -1e30


def _round_up(x, m):
    return ((x + m - 1) // m) * m


# ----------------------------------------------------------------------------
# Pallas kernel: one fused decoder step for a (b_tile, ...) batch tile.
# ----------------------------------------------------------------------------
def decoder_step_kernel(
    # activations (batch-tiled)
    slab_ref, enc_out_ref, enc_feat_ref, ids_ref,
    # parameters (resident, constant index_map)
    wxc_ref, wlstm_ref, wdp_ref, v_ref, wpg_ref, w1_ref, w2_ref, bias_ref,
    # packed, lane-dense outputs
    final_ref, states_ref, misc_ref,
):
    f32 = jnp.float32
    bf16 = jnp.bfloat16
    B = slab_ref.shape[0]
    T = ids_ref.shape[1]
    H = enc_out_ref.shape[2] // 2
    E = wxc_ref.shape[1]
    V_pad = final_ref.shape[1]

    def mm(a, w):
        # bf16 operands on the MXU, f32 accumulation
        return jnp.dot(a.astype(bf16), w, preferred_element_type=f32)

    def sigmoid(z):
        return 1.0 / (1.0 + jnp.exp(-z))

    # ---- unpack the packed activation slab (one wide DMA per tile)
    off = 0
    y = slab_ref[:, off:off + E]; off += E
    h0 = slab_ref[:, off:off + H]; off += H
    c0 = slab_ref[:, off:off + H]; off += H
    ct1 = slab_ref[:, off:off + 2 * H]; off += 2 * H
    mask = slab_ref[:, off:off + T]; off += T
    cov = slab_ref[:, off:off + T]; off += T
    ids = ids_ref[...]

    # ---- bias / small-vector slab rows
    bxc = bias_ref[0:1, 0:E]
    b_lstm = bias_ref[1:2, 0:4 * H]          # b_ih + b_hh pre-summed
    bdp = bias_ref[2:3, 0:2 * H]
    wc = bias_ref[3:4, 0:2 * H]
    b1 = bias_ref[4:5, 0:H]
    b2 = bias_ref[5:6, 0:V_pad]              # padded logits carry -1e30
    bpg = bias_ref[6:7, 0:1]

    # ---- x = x_context(cat(c_t_1, y)) as two matmuls (no lane concat)
    x = mm(ct1, wxc_ref[0:2 * H, :]) + mm(y, wxc_ref[2 * H:2 * H + E, :]) + bxc

    # ---- single-step LSTM cell (PyTorch gate order: i, f, g, o)
    gates = mm(x, wlstm_ref[0:E, :]) + mm(h0, wlstm_ref[E:E + H, :]) + b_lstm
    sig = sigmoid(gates)
    i_g = sig[:, 0:H]
    f_g = sig[:, H:2 * H]
    o_g = sig[:, 3 * H:4 * H]
    g_g = jnp.tanh(gates[:, 2 * H:3 * H])
    c_new = f_g * c0 + i_g * g_g
    h_new = o_g * jnp.tanh(c_new)                                   # lstm_out

    # ---- attention with coverage  (s_t_hat = cat(h_new, c_new))
    dec_fea = mm(h_new, wdp_ref[0:H, :]) + mm(c_new, wdp_ref[H:2 * H, :]) + bdp
    enc_feat = enc_feat_ref[...].astype(f32)
    cov3 = cov[:, :, None]
    att = enc_feat + dec_fea[:, None, :] + cov3 * wc                # (B, T, 2H)
    e = jnp.tanh(att)
    # score contraction on the MXU (batched matmul, flash-attention style)
    v_b = jnp.broadcast_to(v_ref[...], (B, 2 * H, 1))
    scores3 = jnp.einsum('btk,bko->bto', e.astype(bf16), v_b,
                         preferred_element_type=f32)                # (B, T, 1)
    smax = jnp.max(scores3, axis=1, keepdims=True)
    # mask fused into the softmax (identical to softmax -> mask -> renorm);
    # a real row with an all-zero mask yields 0/0 exactly like the PyTorch ref
    ex = jnp.exp(scores3 - smax) * mask[:, :, None]
    attn3 = ex / jnp.sum(ex, axis=1, keepdims=True)                 # exact norm
    enc_out = enc_out_ref[...].astype(f32)
    c_t = jnp.sum(attn3 * enc_out, axis=1)                          # (B, 2H)
    attn2 = jnp.sum(attn3, axis=2)                                  # (B, T)
    cov_next2 = cov + attn2

    # ---- p_gen = sigmoid(Linear(cat(c_t, s_t_hat, x))) via MXU column dots
    p_lin = (mm(c_t, wpg_ref[0:2 * H, :])
             + mm(h_new, wpg_ref[2 * H:3 * H, :])
             + mm(c_new, wpg_ref[3 * H:4 * H, :])
             + mm(x, wpg_ref[4 * H:4 * H + E, :]) + bpg)
    p_gen = sigmoid(p_lin)                                          # (B, 1)

    # ---- output projections + vocab softmax (V padded to a lane multiple;
    #      padded logits are -1e30 so they contribute exactly 0 probability)
    o1 = mm(h_new, w1_ref[0:H, :]) + mm(c_t, w1_ref[H:3 * H, :]) + b1
    o2 = mm(o1, w2_ref[...]) + b2                                   # (B, V_pad)
    vmax = jnp.max(o2, axis=1, keepdims=True)
    vex = jnp.exp(o2 - vmax)
    vocab_dist = vex / jnp.sum(vex, axis=1, keepdims=True)

    # ---- pointer-generator mixture + scatter_add, chunked over 128-lane tiles
    vocab_pg = p_gen * vocab_dist                                   # (B, V_pad)
    attn_pg3 = (1.0 - p_gen)[:, :, None] * attn3                    # (B, T, 1)
    for c in range(V_pad // _LANE):
        lo = c * _LANE
        lane = lo + jax.lax.broadcasted_iota(jnp.int32, (B, T, _LANE), 2)
        onehot = (lane == ids[:, :, None]).astype(f32)
        scat = jnp.sum(attn_pg3 * onehot, axis=1)                   # (B, 128)
        final_ref[:, lo:lo + _LANE] = scat + vocab_pg[:, lo:lo + _LANE]

    # ---- packed lane-dense side outputs
    states_ref[...] = jnp.concatenate([h_new, c_new, c_t], axis=1)  # (B, 4H)
    pad = misc_ref.shape[1] - (2 * T + 1)
    parts = [attn2, cov_next2, p_gen]
    if pad > 0:
        parts.append(jnp.zeros((B, pad), f32))
    misc_ref[...] = jnp.concatenate(parts, axis=1)


# ----------------------------------------------------------------------------
# Parameter packing (fewer, larger DMAs; bf16 weights for the MXU)
# ----------------------------------------------------------------------------
def pack_params(params, v_pad):
    bf16 = jnp.bfloat16
    H, E, V = config.hidden_dim, config.emb_dim, config.vocab_size
    bw = _round_up(max(E, 4 * H, 2 * H, v_pad, 1), _LANE)

    def row(vec):
        vec = jnp.asarray(vec, jnp.float32).reshape(1, -1)
        return jnp.pad(vec, ((0, 0), (0, bw - vec.shape[1])))

    b2 = params["b2"].reshape(1, -1).astype(jnp.float32)
    w2 = params["w2"].astype(jnp.float32)
    if v_pad > V:
        b2 = jnp.concatenate(
            [b2, jnp.full((1, v_pad - V), _NEG_INF, jnp.float32)], axis=1)
        w2 = jnp.pad(w2, ((0, 0), (0, v_pad - V)))

    bias_slab = jnp.concatenate([
        row(params["bxc"]),
        row(params["bih"] + params["bhh"]),   # pre-summed LSTM bias
        row(params["bdp"]),
        row(params["wc"]),
        row(params["b1"]),
        row(b2),
        row(params["bpg"]),
        jnp.zeros((1, bw), jnp.float32),
    ], axis=0)                                # (8, bw)

    return dict(
        wxc=params["wxc"].astype(bf16),                                        # (2H+E, E)
        wlstm=jnp.concatenate([params["wih"], params["whh"]], 0).astype(bf16), # (E+H, 4H)
        wdp=params["wdp"].astype(bf16),                                        # (2H, 2H)
        v=params["v"].astype(bf16),                                            # (2H, 1)
        wpg=params["wpg"].astype(bf16),                                        # (4H+E, 1)
        w1=params["w1"].astype(bf16),                                          # (3H, H)
        w2=w2.astype(bf16),                                                    # (H, V_pad)
        bias=bias_slab,
    )


def _pad_rows(x, n_rows, value=0):
    pad = n_rows - x.shape[0]
    if pad == 0:
        return x
    widths = [(0, pad)] + [(0, 0)] * (x.ndim - 1)
    return jnp.pad(x, widths, constant_values=value)


# ----------------------------------------------------------------------------
# Wrapper
# ----------------------------------------------------------------------------
def decoder_step(params, y_t_1_embd, s_t_1, encoder_outputs, encoder_feature,
                 enc_padding_mask, c_t_1, extra_zeros, enc_batch_extend_vocab,
                 coverage, b_tile=None):
    H = config.hidden_dim
    E = config.emb_dim
    V = config.vocab_size
    B, T, _ = encoder_outputs.shape
    n_extra = 0 if extra_zeros is None else extra_zeros.shape[1]
    V_ext = V + n_extra
    V_pad = _round_up(V_ext, _LANE)

    if b_tile is None:
        b_tile = _TARGET_B_TILE          # bump to 256 on v6e/v7x for big batches
    b_tile = max(8, min(_round_up(B, 8), _round_up(b_tile, 8)))
    B_pad = _round_up(B, b_tile)

    MIS = _round_up(2 * T + 1, _LANE)
    SLAB_W = _round_up(E + 4 * H + 2 * T, _LANE)

    h0 = s_t_1[0].reshape(B, H)
    c0 = s_t_1[1].reshape(B, H)
    enc_feat = encoder_feature.reshape(B, T, 2 * H)

    pk = pack_params(params, V_pad)

    # packed small-activation slab: [y | h0 | c0 | c_t_1 | mask | coverage | 0]
    slab = jnp.concatenate([
        y_t_1_embd.astype(jnp.float32),
        h0.astype(jnp.float32),
        c0.astype(jnp.float32),
        c_t_1.astype(jnp.float32),
        enc_padding_mask.astype(jnp.float32),
        coverage.astype(jnp.float32),
    ], axis=1)
    slab = jnp.pad(slab, ((0, 0), (0, SLAB_W - slab.shape[1])))
    pad_rows = B_pad - B
    if pad_rows:
        pad_blk = jnp.zeros((pad_rows, SLAB_W), jnp.float32)
        # mask = 1 on padded batch rows so the fused masked softmax never hits 0/0
        pad_blk = pad_blk.at[:, E + 4 * H:E + 4 * H + T].set(1.0)
        slab = jnp.concatenate([slab, pad_blk], axis=0)

    acts = (
        slab,
        _pad_rows(encoder_outputs, B_pad).astype(jnp.bfloat16),
        _pad_rows(enc_feat, B_pad).astype(jnp.bfloat16),
        _pad_rows(enc_batch_extend_vocab.astype(jnp.int32), B_pad),
    )
    weights = (pk["wxc"], pk["wlstm"], pk["wdp"], pk["v"], pk["wpg"],
               pk["w1"], pk["w2"], pk["bias"])

    def row_spec(shape):
        nd = len(shape)
        return pl.BlockSpec((b_tile,) + tuple(shape[1:]),
                            lambda b, _nd=nd: (b,) + (0,) * (_nd - 1))

    def full_spec(shape):
        nd = len(shape)
        return pl.BlockSpec(tuple(shape), lambda b, _nd=nd: (0,) * _nd)

    in_specs = ([row_spec(a.shape) for a in acts]
                + [full_spec(w.shape) for w in weights])

    out_shape = (
        jax.ShapeDtypeStruct((B_pad, V_pad), jnp.float32),   # final_dist (padded)
        jax.ShapeDtypeStruct((B_pad, 4 * H), jnp.float32),   # [h | c | context]
        jax.ShapeDtypeStruct((B_pad, MIS), jnp.float32),     # [attn | cov | p_gen | 0]
    )
    out_specs = (
        pl.BlockSpec((b_tile, V_pad), lambda b: (b, 0)),
        pl.BlockSpec((b_tile, 4 * H), lambda b: (b, 0)),
        pl.BlockSpec((b_tile, MIS), lambda b: (b, 0)),
    )

    # VMEM budget: double-buffered activation/output tiles + resident weights
    act_bytes = b_tile * (SLAB_W * 4 + 2 * T * 2 * H * 2 + T * 4)
    out_bytes = b_tile * (V_pad + 4 * H + MIS) * 4
    w_bytes = sum(int(w.size) * w.dtype.itemsize for w in weights)
    scratch = b_tile * T * 2 * H * 4 * 4 + b_tile * V_pad * 4 * 3
    vmem_limit = int(2 * (act_bytes + out_bytes) + 2 * w_bytes + scratch) + (8 << 20)
    vmem_limit = min(max(vmem_limit, 32 << 20), 48 << 20)   # keep v7x (64 MiB) safe

    final_p, states_p, misc_p = pl.pallas_call(
        decoder_step_kernel,
        grid=(B_pad // b_tile,),
        out_shape=out_shape,
        in_specs=in_specs,
        out_specs=out_specs,
        compiler_params=pltpu.CompilerParams(
            dimension_semantics=("parallel",),
            vmem_limit_bytes=vmem_limit),
    )(*acts, *weights)

    final_dist = final_p[:B, :V_ext]
    h_t = states_p[:B, 0:H]
    c_t_state = states_p[:B, H:2 * H]
    c_t_ctx = states_p[:B, 2 * H:4 * H]
    attn = misc_p[:B, 0:T]
    cov_next = misc_p[:B, T:2 * T]
    p_gen = misc_p[:B, 2 * T:2 * T + 1]
    return final_dist, h_t, c_t_state, c_t_ctx, attn, p_gen, cov_next


# ----------------------------------------------------------------------------
# Pure-JAX reference (bf16 matmul operands / bf16 encoder streams, f32 accumulate
# — mirrors the kernel's implementation precision)
# ----------------------------------------------------------------------------
def ref_forward(params, y, s_t_1, enc_out, enc_feat_flat, mask, ct1,
                extra_zeros, ids, coverage):
    H = config.hidden_dim
    B, T, _ = enc_out.shape
    f32, bf = jnp.float32, jnp.bfloat16
    mm = lambda a, w: jnp.dot(a.astype(bf), w.astype(bf), preferred_element_type=f32)

    enc_out = enc_out.astype(bf).astype(f32)
    enc_feat = enc_feat_flat.reshape(B, T, 2 * H).astype(bf).astype(f32)
    h0 = s_t_1[0].reshape(B, H)
    c0 = s_t_1[1].reshape(B, H)

    x = mm(ct1, params["wxc"][:2 * H]) + mm(y, params["wxc"][2 * H:]) + params["bxc"]
    gates = (mm(x, params["wih"]) + params["bih"]
             + mm(h0, params["whh"]) + params["bhh"])
    i_g = jax.nn.sigmoid(gates[:, :H])
    f_g = jax.nn.sigmoid(gates[:, H:2 * H])
    g_g = jnp.tanh(gates[:, 2 * H:3 * H])
    o_g = jax.nn.sigmoid(gates[:, 3 * H:])
    c_new = f_g * c0 + i_g * g_g
    h_new = o_g * jnp.tanh(c_new)

    dec_fea = mm(h_new, params["wdp"][:H]) + mm(c_new, params["wdp"][H:]) + params["bdp"]
    att = enc_feat + dec_fea[:, None, :] + coverage[:, :, None] * params["wc"][None, :, :]
    e = jnp.tanh(att)
    scores = jnp.einsum('btk,k->bt', e.astype(bf), params["v"][:, 0].astype(bf),
                        preferred_element_type=f32)
    soft = jax.nn.softmax(scores, axis=1)
    attn_m = soft * mask
    attn = attn_m / jnp.sum(attn_m, axis=1, keepdims=True)
    c_t = jnp.sum(attn[:, :, None] * enc_out, axis=1)
    cov_next = coverage + attn

    wpg = params["wpg"]
    p_lin = (mm(c_t, wpg[:2 * H]) + mm(h_new, wpg[2 * H:3 * H])
             + mm(c_new, wpg[3 * H:4 * H]) + mm(x, wpg[4 * H:]) + params["bpg"])
    p_gen = jax.nn.sigmoid(p_lin)

    o1 = mm(h_new, params["w1"][:H]) + mm(c_t, params["w1"][H:]) + params["b1"]
    o2 = mm(o1, params["w2"]) + params["b2"]
    vocab_dist = jax.nn.softmax(o2, axis=1)

    vocab_pg = p_gen * vocab_dist
    attn_pg = (1.0 - p_gen) * attn
    ext = jnp.concatenate([vocab_pg, extra_zeros], axis=1) if extra_zeros is not None else vocab_pg
    final = jax.vmap(lambda vd, idx, av: vd.at[idx].add(av))(ext, ids, attn_pg)
    return final, h_new, c_new, c_t, attn, p_gen, cov_next


# ----------------------------------------------------------------------------
# Deterministic synthetic parameter init (shapes per Decoder.__init__)
# ----------------------------------------------------------------------------
def init_params(key):
    H, E, V = config.hidden_dim, config.emb_dim, config.vocab_size
    ks = jax.random.split(key, 14)
    n = lambda k, shape, std: std * jax.random.normal(k, shape, jnp.float32)
    u = lambda k, shape: jax.random.uniform(
        k, shape, jnp.float32, -config.rand_unif_init_mag, config.rand_unif_init_mag)
    # init_lstm_wt: biases zero, forget-gate slice [H:2H] = 1 (both b_ih and b_hh)
    b_lstm = jnp.zeros((1, 4 * H), jnp.float32).at[0, H:2 * H].set(1.0)
    return dict(
        wxc=n(ks[0], (2 * H + E, E), 0.1), bxc=n(ks[1], (1, E), 0.1),
        wih=u(ks[2], (E, 4 * H)), bih=b_lstm,
        whh=u(ks[3], (H, 4 * H)), bhh=b_lstm,
        wdp=n(ks[4], (2 * H, 2 * H), 0.1), bdp=n(ks[5], (1, 2 * H), 0.1),
        wc=n(ks[6], (1, 2 * H), 0.1),
        v=n(ks[7], (2 * H, 1), 0.1),
        wpg=n(ks[8], (4 * H + E, 1), 0.1), bpg=n(ks[9], (1, 1), 0.1),
        w1=n(ks[10], (3 * H, H), 0.1), b1=n(ks[11], (1, H), 0.1),
        w2=n(ks[12], (H, V), config.trunc_norm_init_std),
        b2=n(ks[13], (1, V), config.trunc_norm_init_std),
    )


if __name__ == "__main__":
    H, E, V = config.hidden_dim, config.emb_dim, config.vocab_size
    n_extra = 4
    key = jax.random.PRNGKey(0)
    kp, kd = jax.random.split(key)
    params = init_params(kp)

    def make_inputs(k, B, T):
        ks = jax.random.split(k, 8)
        y_embd = jax.random.normal(ks[0], (B, E), jnp.float32)
        h0 = 0.1 * jax.random.normal(ks[1], (1, B, H), jnp.float32)
        c0 = 0.1 * jax.random.normal(ks[2], (1, B, H), jnp.float32)
        enc_out = jax.random.normal(ks[3], (B, T, 2 * H), jnp.float32)
        enc_feat = jax.random.normal(ks[4], (B * T, 2 * H), jnp.float32)
        mask = jnp.ones((B, T), jnp.float32).at[B - 1, T - 1].set(0.0)
        c_t_1 = 0.1 * jax.random.normal(ks[5], (B, 2 * H), jnp.float32)
        coverage = jnp.zeros((B, T), jnp.float32)
        ids = jax.random.randint(ks[6], (B, T), 0, V + n_extra).astype(jnp.int32)
        extra_zeros = jnp.zeros((B, n_extra), jnp.float32)
        return y_embd, (h0, c0), enc_out, enc_feat, mask, c_t_1, extra_zeros, ids, coverage

    names = ["final_dist", "h_t", "c_t_state", "context", "attn_dist", "p_gen", "coverage"]

    # case 1: tiny batch (single grid step); case 2: multi-step batch grid
    for (B, T, b_tile) in [(2, 8, None), (20, 8, 8)]:
        (y_embd, s01, enc_out, enc_feat, mask, c_t_1, extra_zeros, ids,
         coverage) = make_inputs(jax.random.fold_in(kd, B), B, T)
        outs = decoder_step(params, y_embd, s01, enc_out, enc_feat, mask,
                            c_t_1, extra_zeros, ids, coverage, b_tile=b_tile)
        outs = jax.block_until_ready(outs)
        refs = ref_forward(params, y_embd, s01, enc_out, enc_feat, mask,
                           c_t_1, extra_zeros, ids, coverage)
        for name, a, b in zip(names, outs, refs):
            assert a.shape == b.shape, (name, a.shape, b.shape)
            assert bool(jnp.allclose(a, b, rtol=1e-2, atol=5e-4)), \
                f"mismatch in {name} (B={B})"

    print("KERNEL_OK")
</pallas_src>

<mosaic_0001>
module attributes {stable_mosaic.version = 11 : i64} {
  func.func @decoder_step_kernel(%arg0: i32, %arg1: memref<8x256xf32, #tpu.memory_space<vmem>>, %arg2: memref<8x8x64xbf16, #tpu.memory_space<vmem>>, %arg3: memref<8x8x64xbf16, #tpu.memory_space<vmem>>, %arg4: memref<8x8xi32, #tpu.memory_space<vmem>>, %arg5: memref<96x32xbf16, #tpu.memory_space<vmem>>, %arg6: memref<64x128xbf16, #tpu.memory_space<vmem>>, %arg7: memref<64x64xbf16, #tpu.memory_space<vmem>>, %arg8: memref<64x1xbf16, #tpu.memory_space<vmem>>, %arg9: memref<160x1xbf16, #tpu.memory_space<vmem>>, %arg10: memref<96x32xbf16, #tpu.memory_space<vmem>>, %arg11: memref<32x128xbf16, #tpu.memory_space<vmem>>, %arg12: memref<8x128xf32, #tpu.memory_space<vmem>>, %arg13: memref<8x128xf32, #tpu.memory_space<vmem>>, %arg14: memref<8x128xf32, #tpu.memory_space<vmem>>, %arg15: memref<8x128xf32, #tpu.memory_space<vmem>>) attributes {dimension_semantics = [#tpu.dimension_semantics<parallel>], iteration_bounds = array<i64: 1>, scalar_prefetch = 0 : i64, scratch_operands = 0 : i64, tpu.core_type = #tpu.core_type<tc>, window_params = [{transform_indices = @transform_0, window_bounds = array<i64: 8, 256>}, {transform_indices = @transform_1, window_bounds = array<i64: 8, 8, 64>}, {transform_indices = @transform_2, window_bounds = array<i64: 8, 8, 64>}, {transform_indices = @transform_3, window_bounds = array<i64: 8, 8>}, {pipeline_mode = #tpu.pipeline_mode<synchronous>, transform_indices = @transform_4, window_bounds = array<i64: 96, 32>}, {pipeline_mode = #tpu.pipeline_mode<synchronous>, transform_indices = @transform_5, window_bounds = array<i64: 64, 128>}, {pipeline_mode = #tpu.pipeline_mode<synchronous>, transform_indices = @transform_6, window_bounds = array<i64: 64, 64>}, {pipeline_mode = #tpu.pipeline_mode<synchronous>, transform_indices = @transform_7, window_bounds = array<i64: 64, 1>}, {pipeline_mode = #tpu.pipeline_mode<synchronous>, transform_indices = @transform_8, window_bounds = array<i64: 160, 1>}, {pipeline_mode = #tpu.pipeline_mode<synchronous>, transform_indices = @transform_9, window_bounds = array<i64: 96, 32>}, {pipeline_mode = #tpu.pipeline_mode<synchronous>, transform_indices = @transform_10, window_bounds = array<i64: 32, 128>}, {pipeline_mode = #tpu.pipeline_mode<synchronous>, transform_indices = @transform_11, window_bounds = array<i64: 8, 128>}, {transform_indices = @transform_12, window_bounds = array<i64: 8, 128>}, {transform_indices = @transform_13, window_bounds = array<i64: 8, 128>}, {transform_indices = @transform_14, window_bounds = array<i64: 8, 128>}]} {
    %c0 = arith.constant 0 : index
    %c0_0 = arith.constant 0 : index
    %0 = vector.load %arg1[%c0, %c0_0] : memref<8x256xf32, #tpu.memory_space<vmem>>, vector<8x32xf32>
    %c0_1 = arith.constant 0 : index
    %c32 = arith.constant 32 : index
    %1 = vector.load %arg1[%c0_1, %c32] : memref<8x256xf32, #tpu.memory_space<vmem>>, vector<8x32xf32>
    %c0_2 = arith.constant 0 : index
    %c64 = arith.constant 64 : index
    %2 = vector.load %arg1[%c0_2, %c64] : memref<8x256xf32, #tpu.memory_space<vmem>>, vector<8x32xf32>
    %c0_3 = arith.constant 0 : index
    %c96 = arith.constant 96 : index
    %3 = vector.load %arg1[%c0_3, %c96] : memref<8x256xf32, #tpu.memory_space<vmem>>, vector<8x64xf32>
    %c0_4 = arith.constant 0 : index
    %c160 = arith.constant 160 : index
    %4 = vector.load %arg1[%c0_4, %c160] : memref<8x256xf32, #tpu.memory_space<vmem>>, vector<8x8xf32>
    %c0_5 = arith.constant 0 : index
    %c168 = arith.constant 168 : index
    %5 = vector.load %arg1[%c0_5, %c168] : memref<8x256xf32, #tpu.memory_space<vmem>>, vector<8x8xf32>
    %c0_6 = arith.constant 0 : index
    %c0_7 = arith.constant 0 : index
    %6 = vector.load %arg4[%c0_6, %c0_7] : memref<8x8xi32, #tpu.memory_space<vmem>>, vector<8x8xi32>
    %c0_8 = arith.constant 0 : index
    %c0_9 = arith.constant 0 : index
    %7 = vector.load %arg12[%c0_8, %c0_9] : memref<8x128xf32, #tpu.memory_space<vmem>>, vector<1x32xf32>
    %c1 = arith.constant 1 : index
    %c0_10 = arith.constant 0 : index
    %8 = vector.load %arg12[%c1, %c0_10] : memref<8x128xf32, #tpu.memory_space<vmem>>, vector<1x128xf32>
    %c2 = arith.constant 2 : index
    %c0_11 = arith.constant 0 : index
    %9 = vector.load %arg12[%c2, %c0_11] : memref<8x128xf32, #tpu.memory_space<vmem>>, vector<1x64xf32>
    %c3 = arith.constant 3 : index
    %c0_12 = arith.constant 0 : index
    %10 = vector.load %arg12[%c3, %c0_12] : memref<8x128xf32, #tpu.memory_space<vmem>>, vector<1x64xf32>
    %c4 = arith.constant 4 : index
    %c0_13 = arith.constant 0 : index
    %11 = vector.load %arg12[%c4, %c0_13] : memref<8x128xf32, #tpu.memory_space<vmem>>, vector<1x32xf32>
    %c5 = arith.constant 5 : index
    %c0_14 = arith.constant 0 : index
    %12 = vector.load %arg12[%c5, %c0_14] : memref<8x128xf32, #tpu.memory_space<vmem>>, vector<1x128xf32>
    %c6 = arith.constant 6 : index
    %c0_15 = arith.constant 0 : index
    %13 = vector.load %arg12[%c6, %c0_15] : memref<8x128xf32, #tpu.memory_space<vmem>>, vector<1x1xf32>
    %c0_16 = arith.constant 0 : index
    %c0_17 = arith.constant 0 : index
    %14 = vector.load %arg5[%c0_16, %c0_17] : memref<96x32xbf16, #tpu.memory_space<vmem>>, vector<64x32xbf16>
    %15 = arith.truncf %3 : vector<8x64xf32> to vector<8x64xbf16>
    %cst = arith.constant dense<0.000000e+00> : vector<8x32xf32>
    %16 = tpu.matmul %15, %14, %cst {dimension_numbers = #tpu.dot_dimension_numbers<[1], [0], [0], [1], [0, 0, 1, 1], [], []>} : vector<8x64xbf16>, vector<64x32xbf16>, vector<8x32xf32> -> vector<8x32xf32>
    %c64_18 = arith.constant 64 : index
    %c0_19 = arith.constant 0 : index
    %17 = vector.load %arg5[%c64_18, %c0_19] : memref<96x32xbf16, #tpu.memory_space<vmem>>, vector<32x32xbf16>
    %18 = arith.truncf %0 : vector<8x32xf32> to vector<8x32xbf16>
    %cst_20 = arith.constant dense<0.000000e+00> : vector<8x32xf32>
    %19 = tpu.matmul %18, %17, %cst_20 {dimension_numbers = #tpu.dot_dimension_numbers<[1], [0], [0], [1], [0, 0, 1, 1], [], []>} : vector<8x32xbf16>, vector<32x32xbf16>, vector<8x32xf32> -> vector<8x32xf32>
    %20 = arith.addf %16, %19 : vector<8x32xf32>
    %21 = vector.broadcast %7 : vector<1x32xf32> to vector<8x32xf32>
    %22 = arith.addf %20, %21 : vector<8x32xf32>
    %c0_21 = arith.constant 0 : index
    %c0_22 = arith.constant 0 : index
    %23 = vector.load %arg6[%c0_21, %c0_22] : memref<64x128xbf16, #tpu.memory_space<vmem>>, vector<32x128xbf16>
    %24 = arith.truncf %22 : vector<8x32xf32> to vector<8x32xbf16>
    %cst_23 = arith.constant dense<0.000000e+00> : vector<8x128xf32>
    %25 = tpu.matmul %24, %23, %cst_23 {dimension_numbers = #tpu.dot_dimension_numbers<[1], [0], [0], [1], [0, 0, 1, 1], [], []>} : vector<8x32xbf16>, vector<32x128xbf16>, vector<8x128xf32> -> vector<8x128xf32>
    %c32_24 = arith.constant 32 : index
    %c0_25 = arith.constant 0 : index
    %26 = vector.load %arg6[%c32_24, %c0_25] : memref<64x128xbf16, #tpu.memory_space<vmem>>, vector<32x128xbf16>
    %27 = arith.truncf %1 : vector<8x32xf32> to vector<8x32xbf16>
    %cst_26 = arith.constant dense<0.000000e+00> : vector<8x128xf32>
    %28 = tpu.matmul %27, %26, %cst_26 {dimension_numbers = #tpu.dot_dimension_numbers<[1], [0], [0], [1], [0, 0, 1, 1], [], []>} : vector<8x32xbf16>, vector<32x128xbf16>, vector<8x128xf32> -> vector<8x128xf32>
    %29 = arith.addf %25, %28 : vector<8x128xf32>
    %30 = vector.broadcast %8 : vector<1x128xf32> to vector<8x128xf32>
    %31 = arith.addf %29, %30 : vector<8x128xf32>
    %cst_27 = arith.constant 0.000000e+00 : f32
    %32 = vector.broadcast %cst_27 : f32 to vector<8x128xf32>
    %33 = arith.subf %32, %31 : vector<8x128xf32>
    %34 = math.exp %33 : vector<8x128xf32>
    %cst_28 = arith.constant 1.000000e+00 : f32
    %35 = vector.broadcast %cst_28 : f32 to vector<8x128xf32>
    %36 = arith.addf %35, %34 : vector<8x128xf32>
    %cst_29 = arith.constant 1.000000e+00 : f32
    %37 = vector.broadcast %cst_29 : f32 to vector<8x128xf32>
    %38 = arith.divf %37, %36 : vector<8x128xf32>
    %39 = vector.extract_strided_slice %38 {offsets = [0, 0], sizes = [8, 32], strides = [1, 1]} : vector<8x128xf32> to vector<8x32xf32>
    %40 = vector.extract_strided_slice %38 {offsets = [0, 32], sizes = [8, 32], strides = [1, 1]} : vector<8x128xf32> to vector<8x32xf32>
    %41 = vector.extract_strided_slice %38 {offsets = [0, 96], sizes = [8, 32], strides = [1, 1]} : vector<8x128xf32> to vector<8x32xf32>
    %42 = vector.extract_strided_slice %31 {offsets = [0, 64], sizes = [8, 32], strides = [1, 1]} : vector<8x128xf32> to vector<8x32xf32>
    %43 = math.tanh %42 : vector<8x32xf32>
    %44 = arith.mulf %40, %2 : vector<8x32xf32>
    %45 = arith.mulf %39, %43 : vector<8x32xf32>
    %46 = arith.addf %44, %45 : vector<8x32xf32>
    %47 = math.tanh %46 : vector<8x32xf32>
    %48 = arith.mulf %41, %47 : vector<8x32xf32>
    %c0_30 = arith.constant 0 : index
    %c0_31 = arith.constant 0 : index
    %49 = vector.load %arg7[%c0_30, %c0_31] : memref<64x64xbf16, #tpu.memory_space<vmem>>, vector<32x64xbf16>
    %50 = arith.truncf %48 : vector<8x32xf32> to vector<8x32xbf16>
    %cst_32 = arith.constant dense<0.000000e+00> : vector<8x64xf32>
    %51 = tpu.matmul %50, %49, %cst_32 {dimension_numbers = #tpu.dot_dimension_numbers<[1], [0], [0], [1], [0, 0, 1, 1], [], []>} : vector<8x32xbf16>, vector<32x64xbf16>, vector<8x64xf32> -> vector<8x64xf32>
    %c32_33 = arith.constant 32 : index
    %c0_34 = arith.constant 0 : index
    %52 = vector.load %arg7[%c32_33, %c0_34] : memref<64x64xbf16, #tpu.memory_space<vmem>>, vector<32x64xbf16>
    %53 = arith.truncf %46 : vector<8x32xf32> to vector<8x32xbf16>
    %cst_35 = arith.constant dense<0.000000e+00> : vector<8x64xf32>
    %54 = tpu.matmul %53, %52, %cst_35 {dimension_numbers = #tpu.dot_dimension_numbers<[1], [0], [0], [1], [0, 0, 1, 1], [], []>} : vector<8x32xbf16>, vector<32x64xbf16>, vector<8x64xf32> -> vector<8x64xf32>
    %55 = arith.addf %51, %54 : vector<8x64xf32>
    %56 = vector.broadcast %9 : vector<1x64xf32> to vector<8x64xf32>
    %57 = arith.addf %55, %56 : vector<8x64xf32>
    %c0_36 = arith.constant 0 : index
    %c0_37 = arith.constant 0 : index
    %c0_38 = arith.constant 0 : index
    %58 = vector.load %arg3[%c0_36, %c0_37, %c0_38] : memref<8x8x64xbf16, #tpu.memory_space<vmem>>, vector<8x8x64xbf16>
    %59 = arith.extf %58 : vector<8x8x64xbf16> to vector<8x8x64xf32>
    %60 = vector.shape_cast %5 : vector<8x8xf32> to vector<8x8x1xf32>
    %61 = vector.shape_cast %57 : vector<8x64xf32> to vector<8x1x64xf32>
    %62 = vector.broadcast %61 : vector<8x1x64xf32> to vector<8x8x64xf32>
    %63 = arith.addf %59, %62 : vector<8x8x64xf32>
    %64 = vector.shape_cast %10 : vector<1x64xf32> to vector<1x1x64xf32>
    %65 = vector.broadcast %60 : vector<8x8x1xf32> to vector<8x8x64xf32>
    %66 = vector.broadcast %64 : vector<1x1x64xf32> to vector<8x8x64xf32>
    %67 = arith.mulf %65, %66 : vector<8x8x64xf32>
    %68 = arith.addf %63, %67 : vector<8x8x64xf32>
    %69 = math.tanh %68 : vector<8x8x64xf32>
    %c0_39 = arith.constant 0 : index
    %c0_40 = arith.constant 0 : index
    %70 = vector.load %arg8[%c0_39, %c0_40] : memref<64x1xbf16, #tpu.memory_space<vmem>>, vector<64x1xbf16>
    %71 = vector.shape_cast %70 : vector<64x1xbf16> to vector<1x64x1xbf16>
    %72 = vector.broadcast %71 : vector<1x64x1xbf16> to vector<8x64x1xbf16>
    %73 = arith.truncf %69 : vector<8x8x64xf32> to vector<8x8x64xbf16>
    "tpu.trace_start"() <{level = 10 : i32, message = "btk,bko->bto"}> : () -> ()
    %cst_41 = arith.constant dense<0.000000e+00> : vector<8x8x1xf32>
    %74 = tpu.matmul %73, %72, %cst_41 {dimension_numbers = #tpu.dot_dimension_numbers<[2], [1], [1], [2], [0, 0, 0, 1, 1, 2], [0], [0]>} : vector<8x8x64xbf16>, vector<8x64x1xbf16>, vector<8x8x1xf32> -> vector<8x8x1xf32>
    "tpu.trace_stop"() : () -> ()
    %cst_42 = arith.constant dense<0xFF800000> : vector<8x1xf32>
    %75 = vector.multi_reduction <maximumf>, %74, %cst_42 [1] : vector<8x8x1xf32> to vector<8x1xf32>
    %76 = vector.shape_cast %75 : vector<8x1xf32> to vector<8x1x1xf32>
    %77 = vector.broadcast %76 : vector<8x1x1xf32> to vector<8x8x1xf32>
    %78 = arith.subf %74, %77 : vector<8x8x1xf32>
    %79 = math.exp %78 : vector<8x8x1xf32>
    %80 = vector.shape_cast %4 : vector<8x8xf32> to vector<8x8x1xf32>
    %81 = arith.mulf %79, %80 : vector<8x8x1xf32>
    %cst_43 = arith.constant dense<0.000000e+00> : vector<8x1xf32>
    %82 = vector.multi_reduction <add>, %81, %cst_43 [1] : vector<8x8x1xf32> to vector<8x1xf32>
    %83 = vector.shape_cast %82 : vector<8x1xf32> to vector<8x1x1xf32>
    %84 = vector.broadcast %83 : vector<8x1x1xf32> to vector<8x8x1xf32>
    %85 = arith.divf %81, %84 : vector<8x8x1xf32>
    %c0_44 = arith.constant 0 : index
    %c0_45 = arith.constant 0 : index
    %c0_46 = arith.constant 0 : index
    %86 = vector.load %arg2[%c0_44, %c0_45, %c0_46] : memref<8x8x64xbf16, #tpu.memory_space<vmem>>, vector<8x8x64xbf16>
    %87 = arith.extf %86 : vector<8x8x64xbf16> to vector<8x8x64xf32>
    %88 = vector.broadcast %85 : vector<8x8x1xf32> to vector<8x8x64xf32>
    %89 = arith.mulf %88, %87 : vector<8x8x64xf32>
    %cst_47 = arith.constant dense<0.000000e+00> : vector<8x64xf32>
    %90 = vector.multi_reduction <add>, %89, %cst_47 [1] : vector<8x8x64xf32> to vector<8x64xf32>
    %cst_48 = arith.constant dense<0.000000e+00> : vector<8x8xf32>
    %91 = vector.multi_reduction <add>, %85, %cst_48 [2] : vector<8x8x1xf32> to vector<8x8xf32>
    %92 = arith.addf %5, %91 : vector<8x8xf32>
    %c0_49 = arith.constant 0 : index
    %c0_50 = arith.constant 0 : index
    %93 = vector.load %arg9[%c0_49, %c0_50] : memref<160x1xbf16, #tpu.memory_space<vmem>>, vector<64x1xbf16>
    %94 = arith.truncf %90 : vector<8x64xf32> to vector<8x64xbf16>
    %cst_51 = arith.constant dense<0.000000e+00> : vector<8x1xf32>
    %95 = tpu.matmul %94, %93, %cst_51 {dimension_numbers = #tpu.dot_dimension_numbers<[1], [0], [0], [1], [0, 0, 1, 1], [], []>} : vector<8x64xbf16>, vector<64x1xbf16>, vector<8x1xf32> -> vector<8x1xf32>
    %c64_52 = arith.constant 64 : index
    %c0_53 = arith.constant 0 : index
    %96 = vector.load %arg9[%c64_52, %c0_53] : memref<160x1xbf16, #tpu.memory_space<vmem>>, vector<32x1xbf16>
    %97 = arith.truncf %48 : vector<8x32xf32> to vector<8x32xbf16>
    %cst_54 = arith.constant dense<0.000000e+00> : vector<8x1xf32>
    %98 = tpu.matmul %97, %96, %cst_54 {dimension_numbers = #tpu.dot_dimension_numbers<[1], [0], [0], [1], [0, 0, 1, 1], [], []>} : vector<8x32xbf16>, vector<32x1xbf16>, vector<8x1xf32> -> vector<8x1xf32>
    %99 = arith.addf %95, %98 : vector<8x1xf32>
    %c96_55 = arith.constant 96 : index
    %c0_56 = arith.constant 0 : index
    %100 = vector.load %arg9[%c96_55, %c0_56] : memref<160x1xbf16, #tpu.memory_space<vmem>>, vector<32x1xbf16>
    %101 = arith.truncf %46 : vector<8x32xf32> to vector<8x32xbf16>
    %cst_57 = arith.constant dense<0.000000e+00> : vector<8x1xf32>
    %102 = tpu.matmul %101, %100, %cst_57 {dimension_numbers = #tpu.dot_dimension_numbers<[1], [0], [0], [1], [0, 0, 1, 1], [], []>} : vector<8x32xbf16>, vector<32x1xbf16>, vector<8x1xf32> -> vector<8x1xf32>
    %103 = arith.addf %99, %102 : vector<8x1xf32>
    %c128 = arith.constant 128 : index
    %c0_58 = arith.constant 0 : index
    %104 = vector.load %arg9[%c128, %c0_58] : memref<160x1xbf16, #tpu.memory_space<vmem>>, vector<32x1xbf16>
    %105 = arith.truncf %22 : vector<8x32xf32> to vector<8x32xbf16>
    %cst_59 = arith.constant dense<0.000000e+00> : vector<8x1xf32>
    %106 = tpu.matmul %105, %104, %cst_59 {dimension_numbers = #tpu.dot_dimension_numbers<[1], [0], [0], [1], [0, 0, 1, 1], [], []>} : vector<8x32xbf16>, vector<32x1xbf16>, vector<8x1xf32> -> vector<8x1xf32>
    %107 = arith.addf %103, %106 : vector<8x1xf32>
    %108 = vector.broadcast %13 : vector<1x1xf32> to vector<8x1xf32>
    %109 = arith.addf %107, %108 : vector<8x1xf32>
    %cst_60 = arith.constant 0.000000e+00 : f32
    %110 = vector.broadcast %cst_60 : f32 to vector<8x1xf32>
    %111 = arith.subf %110, %109 : vector<8x1xf32>
    %112 = math.exp %111 : vector<8x1xf32>
    %cst_61 = arith.constant 1.000000e+00 : f32
    %113 = vector.broadcast %cst_61 : f32 to vector<8x1xf32>
    %114 = arith.addf %113, %112 : vector<8x1xf32>
    %cst_62 = arith.constant 1.000000e+00 : f32
    %115 = vector.broadcast %cst_62 : f32 to vector<8x1xf32>
    %116 = arith.divf %115, %114 : vector<8x1xf32>
    %c0_63 = arith.constant 0 : index
    %c0_64 = arith.constant 0 : index
    %117 = vector.load %arg10[%c0_63, %c0_64] : memref<96x32xbf16, #tpu.memory_space<vmem>>, vector<32x32xbf16>
    %118 = arith.truncf %48 : vector<8x32xf32> to vector<8x32xbf16>
    %cst_65 = arith.constant dense<0.000000e+00> : vector<8x32xf32>
    %119 = tpu.matmul %118, %117, %cst_65 {dimension_numbers = #tpu.dot_dimension_numbers<[1], [0], [0], [1], [0, 0, 1, 1], [], []>} : vector<8x32xbf16>, vector<32x32xbf16>, vector<8x32xf32> -> vector<8x32xf32>
    %c32_66 = arith.constant 32 : index
    %c0_67 = arith.constant 0 : index
    %120 = vector.load %arg10[%c32_66, %c0_67] : memref<96x32xbf16, #tpu.memory_space<vmem>>, vector<64x32xbf16>
    %121 = arith.truncf %90 : vector<8x64xf32> to vector<8x64xbf16>
    %cst_68 = arith.constant dense<0.000000e+00> : vector<8x32xf32>
    %122 = tpu.matmul %121, %120, %cst_68 {dimension_numbers = #tpu.dot_dimension_numbers<[1], [0], [0], [1], [0, 0, 1, 1], [], []>} : vector<8x64xbf16>, vector<64x32xbf16>, vector<8x32xf32> -> vector<8x32xf32>
    %123 = arith.addf %119, %122 : vector<8x32xf32>
    %124 = vector.broadcast %11 : vector<1x32xf32> to vector<8x32xf32>
    %125 = arith.addf %123, %124 : vector<8x32xf32>
    %c0_69 = arith.constant 0 : index
    %c0_70 = arith.constant 0 : index
    %126 = vector.load %arg11[%c0_69, %c0_70] : memref<32x128xbf16, #tpu.memory_space<vmem>>, vector<32x128xbf16>
    %127 = arith.truncf %125 : vector<8x32xf32> to vector<8x32xbf16>
    %cst_71 = arith.constant dense<0.000000e+00> : vector<8x128xf32>
    %128 = tpu.matmul %127, %126, %cst_71 {dimension_numbers = #tpu.dot_dimension_numbers<[1], [0], [0], [1], [0, 0, 1, 1], [], []>} : vector<8x32xbf16>, vector<32x128xbf16>, vector<8x128xf32> -> vector<8x128xf32>
    %129 = vector.broadcast %12 : vector<1x128xf32> to vector<8x128xf32>
    %130 = arith.addf %128, %129 : vector<8x128xf32>
    %cst_72 = arith.constant dense<0xFF800000> : vector<8xf32>
    %131 = vector.multi_reduction <maximumf>, %130, %cst_72 [1] : vector<8x128xf32> to vector<8xf32>
    %132 = vector.shape_cast %131 : vector<8xf32> to vector<8x1xf32>
    %133 = vector.broadcast %132 : vector<8x1xf32> to vector<8x128xf32>
    %134 = arith.subf %130, %133 : vector<8x128xf32>
    %135 = math.exp %134 : vector<8x128xf32>
    %cst_73 = arith.constant dense<0.000000e+00> : vector<8xf32>
    %136 = vector.multi_reduction <add>, %135, %cst_73 [1] : vector<8x128xf32> to vector<8xf32>
    %137 = vector.shape_cast %136 : vector<8xf32> to vector<8x1xf32>
    %138 = vector.broadcast %137 : vector<8x1xf32> to vector<8x128xf32>
    %139 = arith.divf %135, %138 : vector<8x128xf32>
    %140 = vector.broadcast %116 : vector<8x1xf32> to vector<8x128xf32>
    %141 = arith.mulf %140, %139 : vector<8x128xf32>
    %cst_74 = arith.constant 1.000000e+00 : f32
    %142 = vector.broadcast %cst_74 : f32 to vector<8x1xf32>
    %143 = arith.subf %142, %116 : vector<8x1xf32>
    %144 = vector.shape_cast %143 : vector<8x1xf32> to vector<8x1x1xf32>
    %145 = vector.broadcast %144 : vector<8x1x1xf32> to vector<8x8x1xf32>
    %146 = arith.mulf %145, %85 : vector<8x8x1xf32>
    %147 = tpu.iota {dimensions = array<i32: 2>} : vector<8x8x128xi32>
    %c0_i32 = arith.constant 0 : i32
    %148 = vector.broadcast %c0_i32 : i32 to vector<8x8x128xi32>
    %149 = arith.addi %148, %147 : vector<8x8x128xi32>
    %150 = vector.shape_cast %6 : vector<8x8xi32> to vector<8x8x1xi32>
    %151 = vector.broadcast %150 : vector<8x8x1xi32> to vector<8x8x128xi32>
    %152 = arith.cmpi eq, %149, %151 : vector<8x8x128xi32>
    %153 = arith.extui %152 : vector<8x8x128xi1> to vector<8x8x128xi32>
    %154 = arith.sitofp %153 : vector<8x8x128xi32> to vector<8x8x128xf32>
    %155 = vector.broadcast %146 : vector<8x8x1xf32> to vector<8x8x128xf32>
    %156 = arith.mulf %155, %154 : vector<8x8x128xf32>
    %cst_75 = arith.constant dense<0.000000e+00> : vector<8x128xf32>
    %157 = vector.multi_reduction <add>, %156, %cst_75 [1] : vector<8x8x128xf32> to vector<8x128xf32>
    %158 = arith.addf %157, %141 : vector<8x128xf32>
    %c0_76 = arith.constant 0 : index
    %c0_77 = arith.constant 0 : index
    %159 = vector.load %arg13[%c0_76, %c0_77] : memref<8x128xf32, #tpu.memory_space<vmem>>, vector<8x128xf32>
    tpu.vector_store %arg13[%c0_76, %c0_77], %158 {strides = array<i32>} : memref<8x128xf32, #tpu.memory_space<vmem>>, vector<8x128xf32>,
    %160 = tpu.concatenate %48, %46, %90 in 1 : vector<8x32xf32>, vector<8x32xf32>, vector<8x64xf32> -> vector<8x128xf32>
    %c0_78 = arith.constant 0 : index
    %c0_79 = arith.constant 0 : index
    %161 = vector.load %arg14[%c0_78, %c0_79] : memref<8x128xf32, #tpu.memory_space<vmem>>, vector<8x128xf32>
    tpu.vector_store %arg14[%c0_78, %c0_79], %160 {strides = array<i32>} : memref<8x128xf32, #tpu.memory_space<vmem>>, vector<8x128xf32>,
    %cst_80 = arith.constant 0.000000e+00 : f32
    %162 = vector.broadcast %cst_80 : f32 to vector<8x111xf32>
    %163 = tpu.concatenate %91, %92, %116, %162 in 1 : vector<8x8xf32>, vector<8x8xf32>, vector<8x1xf32>, vector<8x111xf32> -> vector<8x128xf32>
    %c0_81 = arith.constant 0 : index
    %c0_82 = arith.constant 0 : index
    %164 = vector.load %arg15[%c0_81, %c0_82] : memref<8x128xf32, #tpu.memory_space<vmem>>, vector<8x128xf32>
    tpu.vector_store %arg15[%c0_81, %c0_82], %163 {strides = array<i32>} : memref<8x128xf32, #tpu.memory_space<vmem>>, vector<8x128xf32>,
    return
  }
  func.func @transform_0(%arg0: i32) -> (i32, i32) {
    %c0_i32 = arith.constant 0 : i32
    %c0_i32_0 = arith.constant 0 : i32
    return %arg0, %c0_i32 : i32, i32
  }
  func.func @transform_1(%arg0: i32) -> (i32, i32, i32) {
    %c0_i32 = arith.constant 0 : i32
    %c0_i32_0 = arith.constant 0 : i32
    %c0_i32_1 = arith.constant 0 : i32
    return %arg0, %c0_i32, %c0_i32_0 : i32, i32, i32
  }
  func.func @transform_2(%arg0: i32) -> (i32, i32, i32) {
    %c0_i32 = arith.constant 0 : i32
    %c0_i32_0 = arith.constant 0 : i32
    %c0_i32_1 = arith.constant 0 : i32
    return %arg0, %c0_i32, %c0_i32_0 : i32, i32, i32
  }
  func.func @transform_3(%arg0: i32) -> (i32, i32) {
    %c0_i32 = arith.constant 0 : i32
    %c0_i32_0 = arith.constant 0 : i32
    return %arg0, %c0_i32 : i32, i32
  }
  func.func @transform_4(%arg0: i32) -> (i32, i32) {
    %c0_i32 = arith.constant 0 : i32
    %c0_i32_0 = arith.constant 0 : i32
    %c0_i32_1 = arith.constant 0 : i32
    return %c0_i32, %c0_i32_0 : i32, i32
  }
  func.func @transform_5(%arg0: i32) -> (i32, i32) {
    %c0_i32 = arith.constant 0 : i32
    %c0_i32_0 = arith.constant 0 : i32
    %c0_i32_1 = arith.constant 0 : i32
    return %c0_i32, %c0_i32_0 : i32, i32
  }
  func.func @transform_6(%arg0: i32) -> (i32, i32) {
    %c0_i32 = arith.constant 0 : i32
    %c0_i32_0 = arith.constant 0 : i32
    %c0_i32_1 = arith.constant 0 : i32
    return %c0_i32, %c0_i32_0 : i32, i32
  }
  func.func @transform_7(%arg0: i32) -> (i32, i32) {
    %c0_i32 = arith.constant 0 : i32
    %c0_i32_0 = arith.constant 0 : i32
    %c0_i32_1 = arith.constant 0 : i32
    return %c0_i32, %c0_i32_0 : i32, i32
  }
  func.func @transform_8(%arg0: i32) -> (i32, i32) {
    %c0_i32 = arith.constant 0 : i32
    %c0_i32_0 = arith.constant 0 : i32
    %c0_i32_1 = arith.constant 0 : i32
    return %c0_i32, %c0_i32_0 : i32, i32
  }
  func.func @transform_9(%arg0: i32) -> (i32, i32) {
    %c0_i32 = arith.constant 0 : i32
    %c0_i32_0 = arith.constant 0 : i32
    %c0_i32_1 = arith.constant 0 : i32
    return %c0_i32, %c0_i32_0 : i32, i32
  }
  func.func @transform_10(%arg0: i32) -> (i32, i32) {
    %c0_i32 = arith.constant 0 : i32
    %c0_i32_0 = arith.constant 0 : i32
    %c0_i32_1 = arith.constant 0 : i32
    return %c0_i32, %c0_i32_0 : i32, i32
  }
  func.func @transform_11(%arg0: i32) -> (i32, i32) {
    %c0_i32 = arith.constant 0 : i32
    %c0_i32_0 = arith.constant 0 : i32
    %c0_i32_1 = arith.constant 0 : i32
    return %c0_i32, %c0_i32_0 : i32, i32
  }
  func.func @transform_12(%arg0: i32) -> (i32, i32) {
    %c0_i32 = arith.constant 0 : i32
    %c0_i32_0 = arith.constant 0 : i32
    return %arg0, %c0_i32 : i32, i32
  }
  func.func @transform_13(%arg0: i32) -> (i32, i32) {
    %c0_i32 = arith.constant 0 : i32
    %c0_i32_0 = arith.constant 0 : i32
    return %arg0, %c0_i32 : i32, i32
  }
  func.func @transform_14(%arg0: i32) -> (i32, i32) {
    %c0_i32 = arith.constant 0 : i32
    %c0_i32_0 = arith.constant 0 : i32
    return %arg0, %c0_i32 : i32, i32
  }
}

</mosaic_0001>

<llo_original>
// kernel: tpu_custom_call.1
$region0: #{tpu_custom_call.1}
  #allocation0 [shape = 'u32[]', space=smem, size = 0x4, offset = 0x4, fixed_abs, tag = 'smem constant byte address 0x4 - core index']
  #allocation1 [shape = 'u32[144,128]{1,0:T(1,128)}', space=vmem, size = 0x12000, scoped, tag = 'internal scratch']
  %s0 = inlined_call_operand.vmem [shape: f32[8,256], index: 0, kind: input, shape index: {}]
  %s1 = inlined_call_operand.vmem [shape: bf16[8,8,64], index: 1, kind: input, shape index: {}]
  %s2 = inlined_call_operand.vmem [shape: bf16[8,8,64], index: 2, kind: input, shape index: {}]
  %s3 = inlined_call_operand.vmem [shape: s32[8,8], index: 3, kind: input, shape index: {}]
  %s4 = inlined_call_operand.vmem [shape: bf16[96,32], index: 4, kind: input, shape index: {}]
  %s5 = inlined_call_operand.vmem [shape: bf16[64,128], index: 5, kind: input, shape index: {}]
  %s6 = inlined_call_operand.vmem [shape: bf16[64,64], index: 6, kind: input, shape index: {}]
  %s7 = inlined_call_operand.vmem [shape: bf16[64,1], index: 7, kind: input, shape index: {}]
  %s8 = inlined_call_operand.vmem [shape: bf16[160,1], index: 8, kind: input, shape index: {}]
  %s9 = inlined_call_operand.vmem [shape: bf16[96,32], index: 9, kind: input, shape index: {}]
  %s10 = inlined_call_operand.vmem [shape: bf16[32,128], index: 10, kind: input, shape index: {}]
  %s11 = inlined_call_operand.vmem [shape: f32[8,128], index: 11, kind: input, shape index: {}]
  %s12 = inlined_call_operand.hbm [shape: f32[8,128], index: 12, kind: output, shape index: {0}]
  %s13 = inlined_call_operand.hbm [shape: f32[8,128], index: 13, kind: output, shape index: {1}]
  %s14 = inlined_call_operand.hbm [shape: f32[8,128], index: 14, kind: output, shape index: {2}]
  %15 = xla_tuple %s12, %s13, %s14
  %s16 = sld [smem:[#allocation0]]
  $region74: #{tpu_custom_call.1} parent=0
    _
  %s18 = ssub.s32 1, %s16
  %s19 = scalar_select 0, %s18, %s16
  $region1: #{tpu_custom_call.1} parent=0
    #allocation2 [shape = 'u8[4096]{0}', space=vmem, size = 0x1000, scoped, tag = 'output window, operand 0, single buffered']
    #allocation3 [shape = 's32[1]{0}', space=sflag, size = 0x4, scoped, tag = 'scoped memory for tpu_custom_call.1']
    #allocation4 [shape = 'u8[4096]{0}', space=vmem, size = 0x1000, scoped, tag = 'output window, operand 1, single buffered']
    #allocation5 [shape = 's32[1]{0}', space=sflag, size = 0x4, scoped, tag = 'scoped memory for tpu_custom_call.1']
    #allocation6 [shape = 'u8[4096]{0}', space=vmem, size = 0x1000, scoped, tag = 'output window, operand 2, single buffered']
    %20 = vsyncpa [#allocation3], 0
    %21 = vsyncpa [#allocation5], 0
    // Predicated region
    $region2: #{tpu_custom_call.1} parent=1 // pred_check
      _
    $region3: #{tpu_custom_call.1} parent=1 // pred_check_branch
      %23 = sbr.rel (0) target = $region5
    $region4: #{tpu_custom_call.1} parent=1 // pred_region
      _
    $region5: #{tpu_custom_call.1} parent=1 // pred_fallthru
      _
    // Predicated region
    $region6: #{tpu_custom_call.1} parent=1 // pred_check
      _
    $region7: #{tpu_custom_call.1} parent=1 // pred_check_branch
      %25 = sbr.rel (0) target = $region9
    $region8: #{tpu_custom_call.1} parent=1 // pred_region
      _
    $region9: #{tpu_custom_call.1} parent=1 // pred_fallthru
      _
    // Predicated region
    $region10: #{tpu_custom_call.1} parent=1 // pred_check
      _
    $region11: #{tpu_custom_call.1} parent=1 // pred_check_branch
      %27 = sbr.rel (0) target = $region13
    $region12: #{tpu_custom_call.1} parent=1 // pred_region
      _
    $region13: #{tpu_custom_call.1} parent=1 // pred_fallthru
      _
    // Predicated region
    $region14: #{tpu_custom_call.1} parent=1 // pred_check
      _
    $region15: #{tpu_custom_call.1} parent=1 // pred_check_branch
      %29 = sbr.rel (0) target = $region17
    $region16: #{tpu_custom_call.1} parent=1 // pred_region
      _
    $region17: #{tpu_custom_call.1} parent=1 // pred_fallthru
      _
    // Predicated region
    $region18: #{tpu_custom_call.1} parent=1 // pred_check
      _
    $region19: #{tpu_custom_call.1} parent=1 // pred_check_branch
      %31 = sbr.rel (0) target = $region21
    $region20: #{tpu_custom_call.1} parent=1 // pred_region
      _
    $region21: #{tpu_custom_call.1} parent=1 // pred_fallthru
      _
    // Predicated region
    $region22: #{tpu_custom_call.1} parent=1 // pred_check
      _
    $region23: #{tpu_custom_call.1} parent=1 // pred_check_branch
      %33 = sbr.rel (0) target = $region25
    $region24: #{tpu_custom_call.1} parent=1 // pred_region
      _
    $region25: #{tpu_custom_call.1} parent=1 // pred_fallthru
      _
    // Predicated region
    $region26: #{tpu_custom_call.1} parent=1 // pred_check
      _
    $region27: #{tpu_custom_call.1} parent=1 // pred_check_branch
      %35 = sbr.rel (0) target = $region29
    $region28: #{tpu_custom_call.1} parent=1 // pred_region
      _
    $region29: #{tpu_custom_call.1} parent=1 // pred_fallthru
      _
    // Predicated region
    $region30: #{tpu_custom_call.1} parent=1 // pred_check
      _
    $region31: #{tpu_custom_call.1} parent=1 // pred_check_branch
      %37 = sbr.rel (0) target = $region33
    $region32: #{tpu_custom_call.1} parent=1 // pred_region
      _
    $region33: #{tpu_custom_call.1} parent=1 // pred_fallthru
      _
    // Predicated region
    $region34: #{tpu_custom_call.1} parent=1 // pred_check
      _
    $region35: #{tpu_custom_call.1} parent=1 // pred_check_branch
      %39 = sbr.rel (0) target = $region37
    $region36: #{tpu_custom_call.1} parent=1 // pred_region
      _
    $region37: #{tpu_custom_call.1} parent=1 // pred_fallthru
      _
    // Predicated region
    $region38: #{tpu_custom_call.1} parent=1 // pred_check
      _
    $region39: #{tpu_custom_call.1} parent=1 // pred_check_branch
      %41 = sbr.rel (0) target = $region41
    $region40: #{tpu_custom_call.1} parent=1 // pred_region
      _
    $region41: #{tpu_custom_call.1} parent=1 // pred_fallthru
      _
    // Predicated region
    $region42: #{tpu_custom_call.1} parent=1 // pred_check
      _
    $region43: #{tpu_custom_call.1} parent=1 // pred_check_branch
      %43 = sbr.rel (0) target = $region45
    $region44: #{tpu_custom_call.1} parent=1 // pred_region
      _
    $region45: #{tpu_custom_call.1} parent=1 // pred_fallthru
      _
    // Predicated region
    $region46: #{tpu_custom_call.1} parent=1 // pred_check
      _
    $region47: #{tpu_custom_call.1} parent=1 // pred_check_branch
      %45 = sbr.rel (0) target = $region49
    $region48: #{tpu_custom_call.1} parent=1 // pred_region
      _
    $region49: #{tpu_custom_call.1} parent=1 // pred_fallthru
      _
    %v47 = vld [vmem:[%s0] sm:$0xff]
    %v48 = vld [vmem:[%s0] sm:$0xff]
    %v49 = vld [vmem:[%s0 + $0x8] sm:$0xff]
    %v50 = vld [vmem:[%s3] sm:$0xff]
    %v51 = vld [vmem:[%s11] sm:$0x1]
    %v52 = vld [vmem:[%s11 + $0x1] sm:$0x1]
    %v53 = vld [vmem:[%s11 + $0x2] sm:$0x1]
    %v54 = vld [vmem:[%s11 + $0x3] sm:$0x1]
    %v55 = vld [vmem:[%s11 + $0x4] sm:$0x1]
    %v56 = vld [vmem:[%s11 + $0x5] sm:$0x1]
    %v57 = vld [vmem:[%s11 + $0x6] sm:$0x1]
    %v58 = vld [vmem:[%s4] sm:$0xf]
    %v59 = vld [vmem:[%s4 + $0x4] sm:$0xf]
    %v60 = vld [vmem:[%s4 + $0x8] sm:$0xf]
    %v61 = vld [vmem:[%s4 + $0xc] sm:$0xf]
    %v62 = vld [vmem:[%s4 + $0x10] sm:$0xf]
    %v63 = vld [vmem:[%s4 + $0x14] sm:$0xf]
    %v64 = vld [vmem:[%s4 + $0x18] sm:$0xf]
    %v65 = vld [vmem:[%s4 + $0x1c] sm:$0xf]
    %v66 = vpack.c.bf16 %v48, %v48
    %v67 = vpack.c.bf16 %v49, %v49
    %v68 = vld [vmem:[%s4 + $0x20] sm:$0xf]
    %v69 = vld [vmem:[%s4 + $0x24] sm:$0xf]
    %v70 = vld [vmem:[%s4 + $0x28] sm:$0xf]
    %v71 = vld [vmem:[%s4 + $0x2c] sm:$0xf]
    %v72 = vpack.c.bf16 %v47, %v47
    %v77 = vunpack.c.l.b16 %v68
    %v78 = vunpack.c.l.b16 %v69
    %v79 = vunpack.c.l.b16 %v70
    %v80 = vunpack.c.l.b16 %v71
    %v81 = vpack.c.b16 %v78, %v77
    %v82 = vpack.c.b16 %v80, %v79
    %vm85 = vcmask 261120
    %v87 = vsel %vm85, %v72, 0
    %89 = vmatprep.subr.bf16.mxu0 0
    %90 = vmatpush1.bf16.msra.mxu0 %v81
    %91 = vmatprep.subr.bf16.mxu0 0
    %92 = vmatpush1.bf16.msra.mxu0 %v82
    %93 = vmatprep.subr.bf16.mxu0 0
    %94 = vmatpush1.bf16.msra.mxu0 0
    %95 = vmatprep.subr.bf16.mxu0 0
    %96 = vmatpush1.bf16.msra.mxu0 0
    %97 = vmatprep.subr.bf16.mxu0 0
    %98 = vmatpush1.bf16.msra.mxu0 0
    %99 = vmatprep.subr.bf16.mxu0 0
    %100 = vmatpush1.bf16.msra.mxu0 0
    %101 = vmatprep.subr.bf16.mxu0 0
    %102 = vmatpush1.bf16.msra.mxu0 0
    %103 = vmatprep.subr.bf16.mxu0 0
    %104 = vmatpush1.bf16.msra.mxu0 0
    %105 = vmatprep.subr.bf16.mxu0 0
    %106 = vmatpush1.bf16.msra.mxu0 0
    %107 = vmatprep.subr.bf16.mxu0 0
    %108 = vmatpush1.bf16.msra.mxu0 0
    %109 = vmatprep.subr.bf16.mxu0 0
    %110 = vmatpush1.bf16.msra.mxu0 0
    %111 = vmatprep.subr.bf16.mxu0 0
    %112 = vmatpush1.bf16.msra.mxu0 0
    %113 = vmatprep.subr.bf16.mxu0 0
    %114 = vmatpush1.bf16.msra.mxu0 0
    %115 = vmatprep.subr.bf16.mxu0 0
    %116 = vmatpush1.bf16.msra.mxu0 0
    %117 = vmatprep.subr.bf16.mxu0 0
    %118 = vmatpush1.bf16.msra.mxu0 0
    %119 = vmatprep.subr.bf16.mxu0 0
    %120 = vmatpush1.bf16.msra.mxu0 0
    %121 = vmatprep.mubr.bf16.mxu0 0
    %122 = vmatmul.mubr.bf16.gmra.mrb[0].mxu0 %v87
    %v123 = vpop.f32.mrb[0].mxu0
    %v124 = vadd.f32 0.0, %v123
    %v125 = vpop.f32.mrb[0].mxu0
    %v126 = vpop.f32.mrb[0].mxu0
    %v127 = vpop.f32.mrb[0].mxu0
    %128 = vdwg.mxu0
    %131 = vrot.lane.b32.xlu0 %v66, 32
    %v132 = vpop.permute.xlu0 %131
    %133 = vrot.lane.b32.xlu0 %v67, 32
    %v134 = vpop.permute.xlu0 %133
    %vm135 = vcmask 261120
    %v136 = vsel %vm135, %v132, %v134
    %v145 = vunpack.c.l.b16 %v58
    %v146 = vunpack.c.l.b16 %v59
    %v147 = vunpack.c.l.b16 %v60
    %v148 = vunpack.c.l.b16 %v61
    %v149 = vunpack.c.l.b16 %v62
    %v150 = vunpack.c.l.b16 %v63
    %v151 = vunpack.c.l.b16 %v64
    %v152 = vunpack.c.l.b16 %v65
    %v153 = vpack.c.b16 %v146, %v145
    %v154 = vpack.c.b16 %v148, %v147
    %v155 = vpack.c.b16 %v150, %v149
    %v156 = vpack.c.b16 %v152, %v151
    %vm161 = vcmask 523264
    %v163 = vsel %vm161, %v136, 0
    %165 = vmatprep.subr.bf16.mxu0 0
    %166 = vmatpush1.bf16.msra.mxu0 %v153
    %167 = vmatprep.subr.bf16.mxu0 0
    %168 = vmatpush1.bf16.msra.mxu0 %v154
    %169 = vmatprep.subr.bf16.mxu0 0
    %170 = vmatpush1.bf16.msra.mxu0 %v155
    %171 = vmatprep.subr.bf16.mxu0 0
    %172 = vmatpush1.bf16.msra.mxu0 %v156
    %173 = vmatprep.subr.bf16.mxu0 0
    %174 = vmatpush1.bf16.msra.mxu0 0
    %175 = vmatprep.subr.bf16.mxu0 0
    %176 = vmatpush1.bf16.msra.mxu0 0
    %177 = vmatprep.subr.bf16.mxu0 0
    %178 = vmatpush1.bf16.msra.mxu0 0
    %179 = vmatprep.subr.bf16.mxu0 0
    %180 = vmatpush1.bf16.msra.mxu0 0
    %181 = vmatprep.subr.bf16.mxu0 0
    %182 = vmatpush1.bf16.msra.mxu0 0
    %183 = vmatprep.subr.bf16.mxu0 0
    %184 = vmatpush1.bf16.msra.mxu0 0
    %185 = vmatprep.subr.bf16.mxu0 0
    %186 = vmatpush1.bf16.msra.mxu0 0
    %187 = vmatprep.subr.bf16.mxu0 0
    %188 = vmatpush1.bf16.msra.mxu0 0
    %189 = vmatprep.subr.bf16.mxu0 0
    %190 = vmatpush1.bf16.msra.mxu0 0
    %191 = vmatprep.subr.bf16.mxu0 0
    %192 = vmatpush1.bf16.msra.mxu0 0
    %193 = vmatprep.subr.bf16.mxu0 0
    %194 = vmatpush1.bf16.msra.mxu0 0
    %195 = vmatprep.subr.bf16.mxu0 0
    %196 = vmatpush1.bf16.msra.mxu0 0
    %197 = vmatprep.mubr.bf16.mxu0 0
    %198 = vmatmul.mubr.bf16.gmra.mrb[0].mxu0 %v163
    %v199 = vpop.f32.mrb[0].mxu0
    %v200 = vadd.f32 %v124, %v199
    %v201 = vpop.f32.mrb[0].mxu0
    %v202 = vpop.f32.mrb[0].mxu0
    %v203 = vpop.f32.mrb[0].mxu0
    %204 = vdwg.mxu0
    %v205 = vlaneseq
    %v206 = vshrl.u32 %v205, 7
    %v207 = vsub.s32 0, %v206
    %v208 = vrot.slane %v51, %v207
    %v209 = vadd.f32 %v200, %v208
    %v210 = vld [vmem:[%s5] sm:$0xf]
    %v211 = vld [vmem:[%s5 + $0x4] sm:$0xf]
    %v212 = vld [vmem:[%s5 + $0x8] sm:$0xf]
    %v213 = vld [vmem:[%s5 + $0xc] sm:$0xf]
    %v214 = vpack.c.bf16 %v209, %v209
    %v215 = vld [vmem:[%s5 + $0x10] sm:$0xf]
    %v216 = vld [vmem:[%s5 + $0x14] sm:$0xf]
    %v217 = vld [vmem:[%s5 + $0x18] sm:$0xf]
    %v218 = vld [vmem:[%s5 + $0x1c] sm:$0xf]
    %220 = vrot.lane.b32.xlu0 %v72, 96
    %v221 = vpop.permute.xlu0 %220
    %v226 = vunpack.c.l.b16 %v215
    %v227 = vunpack.c.l.b16 %v216
    %v228 = vunpack.c.l.b16 %v217
    %v229 = vunpack.c.l.b16 %v218
    %v230 = vpack.c.b16 %v227, %v226
    %v231 = vpack.c.b16 %v229, %v228
    %v235 = vsel %vm85, %v221, 0
    %237 = vmatprep.subr.bf16.mxu0 0
    %238 = vmatpush1.bf16.msra.mxu0 %v230
    %239 = vmatprep.subr.bf16.mxu0 0
    %240 = vmatpush1.bf16.msra.mxu0 %v231
    %241 = vmatprep.subr.bf16.mxu0 0
    %242 = vmatpush1.bf16.msra.mxu0 0
    %243 = vmatprep.subr.bf16.mxu0 0
    %244 = vmatpush1.bf16.msra.mxu0 0
    %245 = vmatprep.subr.bf16.mxu0 0
    %246 = vmatpush1.bf16.msra.mxu0 0
    %247 = vmatprep.subr.bf16.mxu0 0
    %248 = vmatpush1.bf16.msra.mxu0 0
    %249 = vmatprep.subr.bf16.mxu0 0
    %250 = vmatpush1.bf16.msra.mxu0 0
    %251 = vmatprep.subr.bf16.mxu0 0
    %252 = vmatpush1.bf16.msra.mxu0 0
    %253 = vmatprep.subr.bf16.mxu0 0
    %254 = vmatpush1.bf16.msra.mxu0 0
    %255 = vmatprep.subr.bf16.mxu0 0
    %256 = vmatpush1.bf16.msra.mxu0 0
    %257 = vmatprep.subr.bf16.mxu0 0
    %258 = vmatpush1.bf16.msra.mxu0 0
    %259 = vmatprep.subr.bf16.mxu0 0
    %260 = vmatpush1.bf16.msra.mxu0 0
    %261 = vmatprep.subr.bf16.mxu0 0
    %262 = vmatpush1.bf16.msra.mxu0 0
    %263 = vmatprep.subr.bf16.mxu0 0
    %264 = vmatpush1.bf16.msra.mxu0 0
    %265 = vmatprep.subr.bf16.mxu0 0
    %266 = vmatpush1.bf16.msra.mxu0 0
    %267 = vmatprep.subr.bf16.mxu0 0
    %268 = vmatpush1.bf16.msra.mxu0 0
    %269 = vmatprep.mubr.bf16.mxu0 0
    %270 = vmatmul.mubr.bf16.gmra.mrb[0].mxu0 %v235
    %v271 = vpop.f32.mrb[0].mxu0
    %v272 = vadd.f32 0.0, %v271
    %v273 = vpop.f32.mrb[0].mxu0
    %v274 = vpop.f32.mrb[0].mxu0
    %v275 = vpop.f32.mrb[0].mxu0
    %276 = vdwg.mxu0
    %v281 = vunpack.c.l.b16 %v210
    %v282 = vunpack.c.l.b16 %v211
    %v283 = vunpack.c.l.b16 %v212
    %v284 = vunpack.c.l.b16 %v213
    %v285 = vpack.c.b16 %v282, %v281
    %v286 = vpack.c.b16 %v284, %v283
    %v290 = vsel %vm85, %v214, 0
    %292 = vmatprep.subr.bf16.mxu0 0
    %293 = vmatpush1.bf16.msra.mxu0 %v285
    %294 = vmatprep.subr.bf16.mxu0 0
    %295 = vmatpush1.bf16.msra.mxu0 %v286
    %296 = vmatprep.subr.bf16.mxu0 0
    %297 = vmatpush1.bf16.msra.mxu0 0
    %298 = vmatprep.subr.bf16.mxu0 0
    %299 = vmatpush1.bf16.msra.mxu0 0
    %300 = vmatprep.subr.bf16.mxu0 0
    %301 = vmatpush1.bf16.msra.mxu0 0
    %302 = vmatprep.subr.bf16.mxu0 0
    %303 = vmatpush1.bf16.msra.mxu0 0
    %304 = vmatprep.subr.bf16.mxu0 0
    %305 = vmatpush1.bf16.msra.mxu0 0
    %306 = vmatprep.subr.bf16.mxu0 0
    %307 = vmatpush1.bf16.msra.mxu0 0
    %308 = vmatprep.subr.bf16.mxu0 0
    %309 = vmatpush1.bf16.msra.mxu0 0
    %310 = vmatprep.subr.bf16.mxu0 0
    %311 = vmatpush1.bf16.msra.mxu0 0
    %312 = vmatprep.subr.bf16.mxu0 0
    %313 = vmatpush1.bf16.msra.mxu0 0
    %314 = vmatprep.subr.bf16.mxu0 0
    %315 = vmatpush1.bf16.msra.mxu0 0
    %316 = vmatprep.subr.bf16.mxu0 0
    %317 = vmatpush1.bf16.msra.mxu0 0
    %318 = vmatprep.subr.bf16.mxu0 0
    %319 = vmatpush1.bf16.msra.mxu0 0
    %320 = vmatprep.subr.bf16.mxu0 0
    %321 = vmatpush1.bf16.msra.mxu0 0
    %322 = vmatprep.subr.bf16.mxu0 0
    %323 = vmatpush1.bf16.msra.mxu0 0
    %324 = vmatprep.mubr.bf16.mxu0 0
    %325 = vmatmul.mubr.bf16.gmra.mrb[0].mxu0 %v290
    %v326 = vpop.f32.mrb[0].mxu0
    %v327 = vadd.f32 %v272, %v326
    %v328 = vpop.f32.mrb[0].mxu0
    %v329 = vpop.f32.mrb[0].mxu0
    %v330 = vpop.f32.mrb[0].mxu0
    %331 = vdwg.mxu0
    %v332 = vlaneseq
    %v333 = vshrl.u32 %v332, 7
    %v334 = vsub.s32 0, %v333
    %v335 = vrot.slane %v52, %v334
    %v336 = vadd.f32 %v327, %v335
    %v337 = vsub.f32 0.0, %v336
    %v338 = vmul.f32 %v337, 1.442695
    %v339 = vpow.pop %v338
    %v340 = vadd.f32 %v339, 1.0
    %v341 = vrcp.pop %v340
    %v342 = vmul.f32 1.0, %v341
    %v343 = vtanh.pop %v336
    %345 = vrot.lane.b32.xlu0 %v47, 96
    %v346 = vpop.permute.xlu0 %345
    %v348 = vmul.f32 %v342, %v346
    %350 = vrot.lane.b32.xlu0 %v343, 64
    %v351 = vpop.permute.xlu0 %350
    %v353 = vmul.f32 %v342, %v351
    %355 = vrot.lane.b32.xlu0 %v353, 32
    %v356 = vpop.permute.xlu0 %355
    %v358 = vadd.f32 %v348, %v356
    %v359 = vtanh.pop %v358
    %361 = vrot.lane.b32.xlu0 %v359, 64
    %v362 = vpop.permute.xlu0 %361
    %v364 = vmul.f32 %v342, %v362
    %v365 = vld [vmem:[%s6] sm:$0xf]
    %v366 = vld [vmem:[%s6 + $0x4] sm:$0xf]
    %v367 = vld [vmem:[%s6 + $0x8] sm:$0xf]
    %v368 = vld [vmem:[%s6 + $0xc] sm:$0xf]
    %v369 = vpack.c.bf16 %v364, %v364
    %v370 = vld [vmem:[%s6 + $0x10] sm:$0xf]
    %v371 = vld [vmem:[%s6 + $0x14] sm:$0xf]
    %v372 = vld [vmem:[%s6 + $0x18] sm:$0xf]
    %v373 = vld [vmem:[%s6 + $0x1c] sm:$0xf]
    %v374 = vpack.c.bf16 %v358, %v358
    %376 = vrot.lane.b32.xlu0 %v374, 96
    %v377 = vpop.permute.xlu0 %376
    %v382 = vunpack.c.l.b16 %v370
    %v383 = vunpack.c.l.b16 %v371
    %v384 = vunpack.c.l.b16 %v372
    %v385 = vunpack.c.l.b16 %v373
    %v386 = vpack.c.b16 %v383, %v382
    %v387 = vpack.c.b16 %v385, %v384
    %v391 = vsel %vm85, %v377, 0
    %393 = vmatprep.subr.bf16.mxu0 0
    %394 = vmatpush1.bf16.msra.mxu0 %v386
    %395 = vmatprep.subr.bf16.mxu0 0
    %396 = vmatpush1.bf16.msra.mxu0 %v387
    %397 = vmatprep.subr.bf16.mxu0 0
    %398 = vmatpush1.bf16.msra.mxu0 0
    %399 = vmatprep.subr.bf16.mxu0 0
    %400 = vmatpush1.bf16.msra.mxu0 0
    %401 = vmatprep.subr.bf16.mxu0 0
    %402 = vmatpush1.bf16.msra.mxu0 0
    %403 = vmatprep.subr.bf16.mxu0 0
    %404 = vmatpush1.bf16.msra.mxu0 0
    %405 = vmatprep.subr.bf16.mxu0 0
    %406 = vmatpush1.bf16.msra.mxu0 0
    %407 = vmatprep.subr.bf16.mxu0 0
    %408 = vmatpush1.bf16.msra.mxu0 0
    %409 = vmatprep.subr.bf16.mxu0 0
    %410 = vmatpush1.bf16.msra.mxu0 0
    %411 = vmatprep.subr.bf16.mxu0 0
    %412 = vmatpush1.bf16.msra.mxu0 0
    %413 = vmatprep.subr.bf16.mxu0 0
    %414 = vmatpush1.bf16.msra.mxu0 0
    %415 = vmatprep.subr.bf16.mxu0 0
    %416 = vmatpush1.bf16.msra.mxu0 0
    %417 = vmatprep.subr.bf16.mxu0 0
    %418 = vmatpush1.bf16.msra.mxu0 0
    %419 = vmatprep.subr.bf16.mxu0 0
    %420 = vmatpush1.bf16.msra.mxu0 0
    %421 = vmatprep.subr.bf16.mxu0 0
    %422 = vmatpush1.bf16.msra.mxu0 0
    %423 = vmatprep.subr.bf16.mxu0 0
    %424 = vmatpush1.bf16.msra.mxu0 0
    %425 = vmatprep.mubr.bf16.mxu0 0
    %426 = vmatmul.mubr.bf16.gmra.mrb[0].mxu0 %v391
    %v427 = vpop.f32.mrb[0].mxu0
    %v428 = vadd.f32 0.0, %v427
    %v429 = vpop.f32.mrb[0].mxu0
    %v430 = vpop.f32.mrb[0].mxu0
    %v431 = vpop.f32.mrb[0].mxu0
    %432 = vdwg.mxu0
    %434 = vrot.lane.b32.xlu0 %v369, 32
    %v435 = vpop.permute.xlu0 %434
    %v440 = vunpack.c.l.b16 %v365
    %v441 = vunpack.c.l.b16 %v366
    %v442 = vunpack.c.l.b16 %v367
    %v443 = vunpack.c.l.b16 %v368
    %v444 = vpack.c.b16 %v441, %v440
    %v445 = vpack.c.b16 %v443, %v442
    %v449 = vsel %vm85, %v435, 0
    %451 = vmatprep.subr.bf16.mxu0 0
    %452 = vmatpush1.bf16.msra.mxu0 %v444
    %453 = vmatprep.subr.bf16.mxu0 0
    %454 = vmatpush1.bf16.msra.mxu0 %v445
    %455 = vmatprep.subr.bf16.mxu0 0
    %456 = vmatpush1.bf16.msra.mxu0 0
    %457 = vmatprep.subr.bf16.mxu0 0
    %458 = vmatpush1.bf16.msra.mxu0 0
    %459 = vmatprep.subr.bf16.mxu0 0
    %460 = vmatpush1.bf16.msra.mxu0 0
    %461 = vmatprep.subr.bf16.mxu0 0
    %462 = vmatpush1.bf16.msra.mxu0 0
    %463 = vmatprep.subr.bf16.mxu0 0
    %464 = vmatpush1.bf16.msra.mxu0 0
    %465 = vmatprep.subr.bf16.mxu0 0
    %466 = vmatpush1.bf16.msra.mxu0 0
    %467 = vmatprep.subr.bf16.mxu0 0
    %468 = vmatpush1.bf16.msra.mxu0 0
    %469 = vmatprep.subr.bf16.mxu0 0
    %470 = vmatpush1.bf16.msra.mxu0 0
    %471 = vmatprep.subr.bf16.mxu0 0
    %472 = vmatpush1.bf16.msra.mxu0 0
    %473 = vmatprep.subr.bf16.mxu0 0
    %474 = vmatpush1.bf16.msra.mxu0 0
    %475 = vmatprep.subr.bf16.mxu0 0
    %476 = vmatpush1.bf16.msra.mxu0 0
    %477 = vmatprep.subr.bf16.mxu0 0
    %478 = vmatpush1.bf16.msra.mxu0 0
    %479 = vmatprep.subr.bf16.mxu0 0
    %480 = vmatpush1.bf16.msra.mxu0 0
    %481 = vmatprep.subr.bf16.mxu0 0
    %482 = vmatpush1.bf16.msra.mxu0 0
    %483 = vmatprep.mubr.bf16.mxu0 0
    %484 = vmatmul.mubr.bf16.gmra.mrb[0].mxu0 %v449
    %v485 = vpop.f32.mrb[0].mxu0
    %v486 = vadd.f32 %v428, %v485
    %v487 = vpop.f32.mrb[0].mxu0
    %v488 = vpop.f32.mrb[0].mxu0
    %v489 = vpop.f32.mrb[0].mxu0
    %490 = vdwg.mxu0
    %v491 = vlaneseq
    %v492 = vshrl.u32 %v491, 7
    %v493 = vsub.s32 0, %v492
    %v494 = vrot.slane %v53, %v493
    %v495 = vadd.f32 %v486, %v494
    %v496 = vld [vmem:[%s2] sm:$0xf]
    %v497 = vld [vmem:[%s2 + $0x4] sm:$0xf]
    %v498 = vld [vmem:[%s2 + $0x8] sm:$0xf]
    %v499 = vld [vmem:[%s2 + $0xc] sm:$0xf]
    %v500 = vld [vmem:[%s2 + $0x10] sm:$0xf]
    %v501 = vld [vmem:[%s2 + $0x14] sm:$0xf]
    %v502 = vld [vmem:[%s2 + $0x18] sm:$0xf]
    %v503 = vld [vmem:[%s2 + $0x1c] sm:$0xf]
    %v504 = vunpack.c.l.bf16 %v496
    %v505 = vunpack.c.l.bf16 %v497
    %v506 = vunpack.c.l.bf16 %v498
    %v507 = vunpack.c.l.bf16 %v499
    %v508 = vunpack.c.l.bf16 %v500
    %v509 = vunpack.c.l.bf16 %v501
    %v510 = vunpack.c.l.bf16 %v502
    %v511 = vunpack.c.l.bf16 %v503
    %v512 = vlaneseq
    %v513 = vshrl.u32 %v512, 7
    %v514 = vsub.s32 0, %v513
    %v515 = vrot.slane %v49, %v514
    %s517 = sor.u32 256, 40
    %518 = vbcast.lane.b32.xlu0 %v515, %s517
    %v519 = vpop.permute.xlu0 %518
    %v520 = vlaneseq
    %v521 = vshrl.u32 %v520, 7
    %v522 = vsub.s32 1, %v521
    %v523 = vrot.slane %v49, %v522
    %s525 = sor.u32 256, 40
    %526 = vbcast.lane.b32.xlu0 %v523, %s525
    %v527 = vpop.permute.xlu0 %526
    %v528 = vlaneseq
    %v529 = vshrl.u32 %v528, 7
    %v530 = vsub.s32 2, %v529
    %v531 = vrot.slane %v49, %v530
    %s533 = sor.u32 256, 40
    %534 = vbcast.lane.b32.xlu0 %v531, %s533
    %v535 = vpop.permute.xlu0 %534
    %v536 = vlaneseq
    %v537 = vshrl.u32 %v536, 7
    %v538 = vsub.s32 3, %v537
    %v539 = vrot.slane %v49, %v538
    %s541 = sor.u32 256, 40
    %542 = vbcast.lane.b32.xlu0 %v539, %s541
    %v543 = vpop.permute.xlu0 %542
    %v544 = vlaneseq
    %v545 = vshrl.u32 %v544, 7
    %v546 = vsub.s32 4, %v545
    %v547 = vrot.slane %v49, %v546
    %s549 = sor.u32 256, 40
    %550 = vbcast.lane.b32.xlu0 %v547, %s549
    %v551 = vpop.permute.xlu0 %550
    %v552 = vlaneseq
    %v553 = vshrl.u32 %v552, 7
    %v554 = vsub.s32 5, %v553
    %v555 = vrot.slane %v49, %v554
    %s557 = sor.u32 256, 40
    %558 = vbcast.lane.b32.xlu0 %v555, %s557
    %v559 = vpop.permute.xlu0 %558
    %v560 = vlaneseq
    %v561 = vshrl.u32 %v560, 7
    %v562 = vsub.s32 6, %v561
    %v563 = vrot.slane %v49, %v562
    %s565 = sor.u32 256, 40
    %566 = vbcast.lane.b32.xlu0 %v563, %s565
    %v567 = vpop.permute.xlu0 %566
    %v568 = vlaneseq
    %v569 = vshrl.u32 %v568, 7
    %v570 = vsub.s32 7, %v569
    %v571 = vrot.slane %v49, %v570
    %s573 = sor.u32 256, 40
    %574 = vbcast.lane.b32.xlu0 %v571, %s573
    %v575 = vpop.permute.xlu0 %574
    %v577 = vcombine.high %v495, %v495
    %v579 = vunpack.c.l.s4 1966171168
    %v580 = vunpack.c.0.s8 %v579
    %v581 = vlaneseq
    %v582 = vshrl.u32 %v581, 7
    %v583 = vsub.s32 %v580, %v582
    %v584 = vrot.slane %v495, %v583
    %v586 = vunpack.c.l.s4 1966171168
    %v587 = vunpack.c.0.s8 %v586
    %v588 = vlaneseq
    %v589 = vshrl.u32 %v588, 7
    %v590 = vsub.s32 %v587, %v589
    %v591 = vrot.slane %v577, %v590
    %v592 = vcombine.high %v584, %v584
    %v593 = vcombine.high %v591, %v591
    %v595 = vunpack.c.l.s4 1966171168
    %v596 = vunpack.c.0.s8 %v595
    %v597 = vlaneseq
    %v598 = vshrl.u32 %v597, 7
    %v599 = vsub.s32 %v596, %v598
    %v600 = vrot.slane %v584, %v599
    %v602 = vunpack.c.l.s4 1966171168
    %v603 = vunpack.c.0.s8 %v602
    %v604 = vlaneseq
    %v605 = vshrl.u32 %v604, 7
    %v606 = vsub.s32 %v603, %v605
    %v607 = vrot.slane %v591, %v606
    %v609 = vunpack.c.l.s4 1966171168
    %v610 = vunpack.c.0.s8 %v609
    %v611 = vlaneseq
    %v612 = vshrl.u32 %v611, 7
    %v613 = vsub.s32 %v610, %v612
    %v614 = vrot.slane %v592, %v613
    %v616 = vunpack.c.l.s4 1966171168
    %v617 = vunpack.c.0.s8 %v616
    %v618 = vlaneseq
    %v619 = vshrl.u32 %v618, 7
    %v620 = vsub.s32 %v617, %v619
    %v621 = vrot.slane %v593, %v620
    %v622 = vcombine.high %v600, %v600
    %v623 = vcombine.high %v607, %v607
    %v624 = vcombine.high %v614, %v614
    %v625 = vcombine.high %v621, %v621
    %v626 = vlaneseq
    %v627 = vshrl.u32 %v626, 7
    %v628 = vsub.s32 0, %v627
    %v629 = vrot.slane %v600, %v628
    %v630 = vlaneseq
    %v631 = vshrl.u32 %v630, 7
    %v632 = vsub.s32 0, %v631
    %v633 = vrot.slane %v614, %v632
    %v634 = vlaneseq
    %v635 = vshrl.u32 %v634, 7
    %v636 = vsub.s32 0, %v635
    %v637 = vrot.slane %v622, %v636
    %v638 = vlaneseq
    %v639 = vshrl.u32 %v638, 7
    %v640 = vsub.s32 0, %v639
    %v641 = vrot.slane %v624, %v640
    %v642 = vlaneseq
    %v643 = vshrl.u32 %v642, 7
    %v644 = vsub.s32 0, %v643
    %v645 = vrot.slane %v607, %v644
    %v646 = vlaneseq
    %v647 = vshrl.u32 %v646, 7
    %v648 = vsub.s32 0, %v647
    %v649 = vrot.slane %v621, %v648
    %v650 = vlaneseq
    %v651 = vshrl.u32 %v650, 7
    %v652 = vsub.s32 0, %v651
    %v653 = vrot.slane %v623, %v652
    %v654 = vlaneseq
    %v655 = vshrl.u32 %v654, 7
    %v656 = vsub.s32 0, %v655
    %v657 = vrot.slane %v625, %v656
    %v666 = vadd.f32 %v504, %v629
    %v667 = vadd.f32 %v505, %v633
    %v668 = vadd.f32 %v506, %v637
    %v669 = vadd.f32 %v507, %v641
    %v670 = vadd.f32 %v508, %v645
    %v671 = vadd.f32 %v509, %v649
    %v672 = vadd.f32 %v510, %v653
    %v673 = vadd.f32 %v511, %v657
    %v674 = vlaneseq
    %v675 = vshrl.u32 %v674, 7
    %v676 = vsub.s32 0, %v675
    %v677 = vrot.slane %v54, %v676
    %v678 = vmul.f32 %v519, %v677
    %v679 = vmul.f32 %v527, %v677
    %v680 = vmul.f32 %v535, %v677
    %v681 = vmul.f32 %v543, %v677
    %v682 = vmul.f32 %v551, %v677
    %v683 = vmul.f32 %v559, %v677
    %v684 = vmul.f32 %v567, %v677
    %v685 = vmul.f32 %v575, %v677
    %v686 = vadd.f32 %v666, %v678
    %v687 = vadd.f32 %v667, %v679
    %v688 = vadd.f32 %v668, %v680
    %v689 = vadd.f32 %v669, %v681
    %v690 = vadd.f32 %v670, %v682
    %v691 = vadd.f32 %v671, %v683
    %v692 = vadd.f32 %v672, %v684
    %v693 = vadd.f32 %v673, %v685
    %v694 = vtanh.pop %v686
    %v695 = vtanh.pop %v687
    %v696 = vtanh.pop %v688
    %v697 = vtanh.pop %v689
    %v698 = vtanh.pop %v690
    %v699 = vtanh.pop %v691
    %v700 = vtanh.pop %v692
    %v701 = vtanh.pop %v693
    %v702 = vld [vmem:[%s7] sm:$0xf]
    %v703 = vld [vmem:[%s7 + $0x4] sm:$0xf]
    %v704 = vld [vmem:[%s7 + $0x8] sm:$0xf]
    %v705 = vld [vmem:[%s7 + $0xc] sm:$0xf]
    %v706 = vld [vmem:[%s7 + $0x10] sm:$0xf]
    %v707 = vld [vmem:[%s7 + $0x14] sm:$0xf]
    %v708 = vld [vmem:[%s7 + $0x18] sm:$0xf]
    %v709 = vld [vmem:[%s7 + $0x1c] sm:$0xf]
    %v710 = vpack.c.bf16 %v694, %v694
    %v711 = vpack.c.bf16 %v695, %v695
    %v712 = vpack.c.bf16 %v696, %v696
    %v713 = vpack.c.bf16 %v697, %v697
    %v714 = vpack.c.bf16 %v698, %v698
    %v715 = vpack.c.bf16 %v699, %v699
    %v716 = vpack.c.bf16 %v700, %v700
    %v717 = vpack.c.bf16 %v701, %v701
    %v726 = vunpack.c.l.b16 %v702
    %v727 = vunpack.c.l.b16 %v703
    %v728 = vunpack.c.l.b16 %v704
    %v729 = vunpack.c.l.b16 %v705
    %v730 = vunpack.c.l.b16 %v706
    %v731 = vunpack.c.l.b16 %v707
    %v732 = vunpack.c.l.b16 %v708
    %v733 = vunpack.c.l.b16 %v709
    %v734 = vpack.c.b16 %v727, %v726
    %v735 = vpack.c.b16 %v729, %v728
    %v736 = vpack.c.b16 %v731, %v730
    %v737 = vpack.c.b16 %v733, %v732
    %v743 = vsel %vm161, %v710, 0
    %745 = vmatprep.subr.bf16.mxu0 0
    %746 = vmatpush1.bf16.msra.mxu0 %v734
    %747 = vmatprep.subr.bf16.mxu0 0
    %748 = vmatpush1.bf16.msra.mxu0 %v735
    %749 = vmatprep.subr.bf16.mxu0 0
    %750 = vmatpush1.bf16.msra.mxu0 %v736
    %751 = vmatprep.subr.bf16.mxu0 0
    %752 = vmatpush1.bf16.msra.mxu0 %v737
    %753 = vmatprep.subr.bf16.mxu0 0
    %754 = vmatpush1.bf16.msra.mxu0 0
    %755 = vmatprep.subr.bf16.mxu0 0
    %756 = vmatpush1.bf16.msra.mxu0 0
    %757 = vmatprep.subr.bf16.mxu0 0
    %758 = vmatpush1.bf16.msra.mxu0 0
    %759 = vmatprep.subr.bf16.mxu0 0
    %760 = vmatpush1.bf16.msra.mxu0 0
    %761 = vmatprep.subr.bf16.mxu0 0
    %762 = vmatpush1.bf16.msra.mxu0 0
    %763 = vmatprep.subr.bf16.mxu0 0
    %764 = vmatpush1.bf16.msra.mxu0 0
    %765 = vmatprep.subr.bf16.mxu0 0
    %766 = vmatpush1.bf16.msra.mxu0 0
    %767 = vmatprep.subr.bf16.mxu0 0
    %768 = vmatpush1.bf16.msra.mxu0 0
    %769 = vmatprep.subr.bf16.mxu0 0
    %770 = vmatpush1.bf16.msra.mxu0 0
    %771 = vmatprep.subr.bf16.mxu0 0
    %772 = vmatpush1.bf16.msra.mxu0 0
    %773 = vmatprep.subr.bf16.mxu0 0
    %774 = vmatpush1.bf16.msra.mxu0 0
    %775 = vmatprep.subr.bf16.mxu0 0
    %776 = vmatpush1.bf16.msra.mxu0 0
    %777 = vmatprep.mubr.bf16.mxu0 0
    %778 = vmatmul.mubr.bf16.gmra.mrb[0].mxu0 %v743
    %v779 = vpop.f32.mrb[0].mxu0
    %v780 = vadd.f32 0.0, %v779
    %v781 = vpop.f32.mrb[0].mxu0
    %v782 = vpop.f32.mrb[0].mxu0
    %v783 = vpop.f32.mrb[0].mxu0
    %784 = vdwg.mxu0
    %v786 = vsel %vm161, %v711, 0
    %788 = vmatprep.subr.bf16.mxu0 0
    %789 = vmatpush1.bf16.msra.mxu0 %v734
    %790 = vmatprep.subr.bf16.mxu0 0
    %791 = vmatpush1.bf16.msra.mxu0 %v735
    %792 = vmatprep.subr.bf16.mxu0 0
    %793 = vmatpush1.bf16.msra.mxu0 %v736
    %794 = vmatprep.subr.bf16.mxu0 0
    %795 = vmatpush1.bf16.msra.mxu0 %v737
    %796 = vmatprep.subr.bf16.mxu0 0
    %797 = vmatpush1.bf16.msra.mxu0 0
    %798 = vmatprep.subr.bf16.mxu0 0
    %799 = vmatpush1.bf16.msra.mxu0 0
    %800 = vmatprep.subr.bf16.mxu0 0
    %801 = vmatpush1.bf16.msra.mxu0 0
    %802 = vmatprep.subr.bf16.mxu0 0
    %803 = vmatpush1.bf16.msra.mxu0 0
    %804 = vmatprep.subr.bf16.mxu0 0
    %805 = vmatpush1.bf16.msra.mxu0 0
    %806 = vmatprep.subr.bf16.mxu0 0
    %807 = vmatpush1.bf16.msra.mxu0 0
    %808 = vmatprep.subr.bf16.mxu0 0
    %809 = vmatpush1.bf16.msra.mxu0 0
    %810 = vmatprep.subr.bf16.mxu0 0
    %811 = vmatpush1.bf16.msra.mxu0 0
    %812 = vmatprep.subr.bf16.mxu0 0
    %813 = vmatpush1.bf16.msra.mxu0 0
    %814 = vmatprep.subr.bf16.mxu0 0
    %815 = vmatpush1.bf16.msra.mxu0 0
    %816 = vmatprep.subr.bf16.mxu0 0
    %817 = vmatpush1.bf16.msra.mxu0 0
    %818 = vmatprep.subr.bf16.mxu0 0
    %819 = vmatpush1.bf16.msra.mxu0 0
    %820 = vmatprep.mubr.bf16.mxu0 0
    %821 = vmatmul.mubr.bf16.gmra.mrb[0].mxu0 %v786
    %v822 = vpop.f32.mrb[0].mxu0
    %v823 = vadd.f32 0.0, %v822
    %v824 = vpop.f32.mrb[0].mxu0
    %v825 = vpop.f32.mrb[0].mxu0
    %v826 = vpop.f32.mrb[0].mxu0
    %827 = vdwg.mxu0
    %v829 = vsel %vm161, %v712, 0
    %831 = vmatprep.subr.bf16.mxu0 0
    %832 = vmatpush1.bf16.msra.mxu0 %v734
    %833 = vmatprep.subr.bf16.mxu0 0
    %834 = vmatpush1.bf16.msra.mxu0 %v735
    %835 = vmatprep.subr.bf16.mxu0 0
    %836 = vmatpush1.bf16.msra.mxu0 %v736
    %837 = vmatprep.subr.bf16.mxu0 0
    %838 = vmatpush1.bf16.msra.mxu0 %v737
    %839 = vmatprep.subr.bf16.mxu0 0
    %840 = vmatpush1.bf16.msra.mxu0 0
    %841 = vmatprep.subr.bf16.mxu0 0
    %842 = vmatpush1.bf16.msra.mxu0 0
    %843 = vmatprep.subr.bf16.mxu0 0
    %844 = vmatpush1.bf16.msra.mxu0 0
    %845 = vmatprep.subr.bf16.mxu0 0
    %846 = vmatpush1.bf16.msra.mxu0 0
    %847 = vmatprep.subr.bf16.mxu0 0
    %848 = vmatpush1.bf16.msra.mxu0 0
    %849 = vmatprep.subr.bf16.mxu0 0
    %850 = vmatpush1.bf16.msra.mxu0 0
    %851 = vmatprep.subr.bf16.mxu0 0
    %852 = vmatpush1.bf16.msra.mxu0 0
    %853 = vmatprep.subr.bf16.mxu0 0
    %854 = vmatpush1.bf16.msra.mxu0 0
    %855 = vmatprep.subr.bf16.mxu0 0
    %856 = vmatpush1.bf16.msra.mxu0 0
    %857 = vmatprep.subr.bf16.mxu0 0
    %858 = vmatpush1.bf16.msra.mxu0 0
    %859 = vmatprep.subr.bf16.mxu0 0
    %860 = vmatpush1.bf16.msra.mxu0 0
    %861 = vmatprep.subr.bf16.mxu0 0
    %862 = vmatpush1.bf16.msra.mxu0 0
    %863 = vmatprep.mubr.bf16.mxu0 0
    %864 = vmatmul.mubr.bf16.gmra.mrb[0].mxu0 %v829
    %v865 = vpop.f32.mrb[0].mxu0
    %v866 = vadd.f32 0.0, %v865
    %v867 = vpop.f32.mrb[0].mxu0
    %v868 = vpop.f32.mrb[0].mxu0
    %v869 = vpop.f32.mrb[0].mxu0
    %870 = vdwg.mxu0
    %v872 = vsel %vm161, %v713, 0
    %874 = vmatprep.subr.bf16.mxu0 0
    %875 = vmatpush1.bf16.msra.mxu0 %v734
    %876 = vmatprep.subr.bf16.mxu0 0
    %877 = vmatpush1.bf16.msra.mxu0 %v735
    %878 = vmatprep.subr.bf16.mxu0 0
    %879 = vmatpush1.bf16.msra.mxu0 %v736
    %880 = vmatprep.subr.bf16.mxu0 0
    %881 = vmatpush1.bf16.msra.mxu0 %v737
    %882 = vmatprep.subr.bf16.mxu0 0
    %883 = vmatpush1.bf16.msra.mxu0 0
    %884 = vmatprep.subr.bf16.mxu0 0
    %885 = vmatpush1.bf16.msra.mxu0 0
    %886 = vmatprep.subr.bf16.mxu0 0
    %887 = vmatpush1.bf16.msra.mxu0 0
    %888 = vmatprep.subr.bf16.mxu0 0
    %889 = vmatpush1.bf16.msra.mxu0 0
    %890 = vmatprep.subr.bf16.mxu0 0
    %891 = vmatpush1.bf16.msra.mxu0 0
    %892 = vmatprep.subr.bf16.mxu0 0
    %893 = vmatpush1.bf16.msra.mxu0 0
    %894 = vmatprep.subr.bf16.mxu0 0
    %895 = vmatpush1.bf16.msra.mxu0 0
    %896 = vmatprep.subr.bf16.mxu0 0
    %897 = vmatpush1.bf16.msra.mxu0 0
    %898 = vmatprep.subr.bf16.mxu0 0
    %899 = vmatpush1.bf16.msra.mxu0 0
    %900 = vmatprep.subr.bf16.mxu0 0
    %901 = vmatpush1.bf16.msra.mxu0 0
    %902 = vmatprep.subr.bf16.mxu0 0
    %903 = vmatpush1.bf16.msra.mxu0 0
    %904 = vmatprep.subr.bf16.mxu0 0
    %905 = vmatpush1.bf16.msra.mxu0 0
    %906 = vmatprep.mubr.bf16.mxu0 0
    %907 = vmatmul.mubr.bf16.gmra.mrb[0].mxu0 %v872
    %v908 = vpop.f32.mrb[0].mxu0
    %v909 = vadd.f32 0.0, %v908
    %v910 = vpop.f32.mrb[0].mxu0
    %v911 = vpop.f32.mrb[0].mxu0
    %v912 = vpop.f32.mrb[0].mxu0
    %913 = vdwg.mxu0
    %v915 = vsel %vm161, %v714, 0
    %917 = vmatprep.subr.bf16.mxu0 0
    %918 = vmatpush1.bf16.msra.mxu0 %v734
    %919 = vmatprep.subr.bf16.mxu0 0
    %920 = vmatpush1.bf16.msra.mxu0 %v735
    %921 = vmatprep.subr.bf16.mxu0 0
    %922 = vmatpush1.bf16.msra.mxu0 %v736
    %923 = vmatprep.subr.bf16.mxu0 0
    %924 = vmatpush1.bf16.msra.mxu0 %v737
    %925 = vmatprep.subr.bf16.mxu0 0
    %926 = vmatpush1.bf16.msra.mxu0 0
    %927 = vmatprep.subr.bf16.mxu0 0
    %928 = vmatpush1.bf16.msra.mxu0 0
    %929 = vmatprep.subr.bf16.mxu0 0
    %930 = vmatpush1.bf16.msra.mxu0 0
    %931 = vmatprep.subr.bf16.mxu0 0
    %932 = vmatpush1.bf16.msra.mxu0 0
    %933 = vmatprep.subr.bf16.mxu0 0
    %934 = vmatpush1.bf16.msra.mxu0 0
    %935 = vmatprep.subr.bf16.mxu0 0
    %936 = vmatpush1.bf16.msra.mxu0 0
    %937 = vmatprep.subr.bf16.mxu0 0
    %938 = vmatpush1.bf16.msra.mxu0 0
    %939 = vmatprep.subr.bf16.mxu0 0
    %940 = vmatpush1.bf16.msra.mxu0 0
    %941 = vmatprep.subr.bf16.mxu0 0
    %942 = vmatpush1.bf16.msra.mxu0 0
    %943 = vmatprep.subr.bf16.mxu0 0
    %944 = vmatpush1.bf16.msra.mxu0 0
    %945 = vmatprep.subr.bf16.mxu0 0
    %946 = vmatpush1.bf16.msra.mxu0 0
    %947 = vmatprep.subr.bf16.mxu0 0
    %948 = vmatpush1.bf16.msra.mxu0 0
    %949 = vmatprep.mubr.bf16.mxu0 0
    %950 = vmatmul.mubr.bf16.gmra.mrb[0].mxu0 %v915
    %v951 = vpop.f32.mrb[0].mxu0
    %v952 = vadd.f32 0.0, %v951
    %v953 = vpop.f32.mrb[0].mxu0
    %v954 = vpop.f32.mrb[0].mxu0
    %v955 = vpop.f32.mrb[0].mxu0
    %956 = vdwg.mxu0
    %v958 = vsel %vm161, %v715, 0
    %960 = vmatprep.subr.bf16.mxu0 0
    %961 = vmatpush1.bf16.msra.mxu0 %v734
    %962 = vmatprep.subr.bf16.mxu0 0
    %963 = vmatpush1.bf16.msra.mxu0 %v735
    %964 = vmatprep.subr.bf16.mxu0 0
    %965 = vmatpush1.bf16.msra.mxu0 %v736
    %966 = vmatprep.subr.bf16.mxu0 0
    %967 = vmatpush1.bf16.msra.mxu0 %v737
    %968 = vmatprep.subr.bf16.mxu0 0
    %969 = vmatpush1.bf16.msra.mxu0 0
    %970 = vmatprep.subr.bf16.mxu0 0
    %971 = vmatpush1.bf16.msra.mxu0 0
    %972 = vmatprep.subr.bf16.mxu0 0
    %973 = vmatpush1.bf16.msra.mxu0 0
    %974 = vmatprep.subr.bf16.mxu0 0
    %975 = vmatpush1.bf16.msra.mxu0 0
    %976 = vmatprep.subr.bf16.mxu0 0
    %977 = vmatpush1.bf16.msra.mxu0 0
    %978 = vmatprep.subr.bf16.mxu0 0
    %979 = vmatpush1.bf16.msra.mxu0 0
    %980 = vmatprep.subr.bf16.mxu0 0
    %981 = vmatpush1.bf16.msra.mxu0 0
    %982 = vmatprep.subr.bf16.mxu0 0
    %983 = vmatpush1.bf16.msra.mxu0 0
    %984 = vmatprep.subr.bf16.mxu0 0
    %985 = vmatpush1.bf16.msra.mxu0 0
    %986 = vmatprep.subr.bf16.mxu0 0
    %987 = vmatpush1.bf16.msra.mxu0 0
    %988 = vmatprep.subr.bf16.mxu0 0
    %989 = vmatpush1.bf16.msra.mxu0 0
    %990 = vmatprep.subr.bf16.mxu0 0
    %991 = vmatpush1.bf16.msra.mxu0 0
    %992 = vmatprep.mubr.bf16.mxu0 0
    %993 = vmatmul.mubr.bf16.gmra.mrb[0].mxu0 %v958
    %v994 = vpop.f32.mrb[0].mxu0
    %v995 = vadd.f32 0.0, %v994
    %v996 = vpop.f32.mrb[0].mxu0
    %v997 = vpop.f32.mrb[0].mxu0
    %v998 = vpop.f32.mrb[0].mxu0
    %999 = vdwg.mxu0
    %v1001 = vsel %vm161, %v716, 0
    %1003 = vmatprep.subr.bf16.mxu0 0
    %1004 = vmatpush1.bf16.msra.mxu0 %v734
    %1005 = vmatprep.subr.bf16.mxu0 0
    %1006 = vmatpush1.bf16.msra.mxu0 %v735
    %1007 = vmatprep.subr.bf16.mxu0 0
    %1008 = vmatpush1.bf16.msra.mxu0 %v736
    %1009 = vmatprep.subr.bf16.mxu0 0
    %1010 = vmatpush1.bf16.msra.mxu0 %v737
    %1011 = vmatprep.subr.bf16.mxu0 0
    %1012 = vmatpush1.bf16.msra.mxu0 0
    %1013 = vmatprep.subr.bf16.mxu0 0
    %1014 = vmatpush1.bf16.msra.mxu0 0
    %1015 = vmatprep.subr.bf16.mxu0 0
    %1016 = vmatpush1.bf16.msra.mxu0 0
    %1017 = vmatprep.subr.bf16.mxu0 0
    %1018 = vmatpush1.bf16.msra.mxu0 0
    %1019 = vmatprep.subr.bf16.mxu0 0
    %1020 = vmatpush1.bf16.msra.mxu0 0
    %1021 = vmatprep.subr.bf16.mxu0 0
    %1022 = vmatpush1.bf16.msra.mxu0 0
    %1023 = vmatprep.subr.bf16.mxu0 0
    %1024 = vmatpush1.bf16.msra.mxu0 0
    %1025 = vmatprep.subr.bf16.mxu0 0
    %1026 = vmatpush1.bf16.msra.mxu0 0
    %1027 = vmatprep.subr.bf16.mxu0 0
    %1028 = vmatpush1.bf16.msra.mxu0 0
    %1029 = vmatprep.subr.bf16.mxu0 0
    %1030 = vmatpush1.bf16.msra.mxu0 0
    %1031 = vmatprep.subr.bf16.mxu0 0
    %1032 = vmatpush1.bf16.msra.mxu0 0
    %1033 = vmatprep.subr.bf16.mxu0 0
    %1034 = vmatpush1.bf16.msra.mxu0 0
    %1035 = vmatprep.mubr.bf16.mxu0 0
    %1036 = vmatmul.mubr.bf16.gmra.mrb[0].mxu0 %v1001
    %v1037 = vpop.f32.mrb[0].mxu0
    %v1038 = vadd.f32 0.0, %v1037
    %v1039 = vpop.f32.mrb[0].mxu0
    %v1040 = vpop.f32.mrb[0].mxu0
    %v1041 = vpop.f32.mrb[0].mxu0
    %1042 = vdwg.mxu0
    %v1044 = vsel %vm161, %v717, 0
    %1046 = vmatprep.subr.bf16.mxu0 0
    %1047 = vmatpush1.bf16.msra.mxu0 %v734
    %1048 = vmatprep.subr.bf16.mxu0 0
    %1049 = vmatpush1.bf16.msra.mxu0 %v735
    %1050 = vmatprep.subr.bf16.mxu0 0
    %1051 = vmatpush1.bf16.msra.mxu0 %v736
    %1052 = vmatprep.subr.bf16.mxu0 0
    %1053 = vmatpush1.bf16.msra.mxu0 %v737
    %1054 = vmatprep.subr.bf16.mxu0 0
    %1055 = vmatpush1.bf16.msra.mxu0 0
    %1056 = vmatprep.subr.bf16.mxu0 0
    %1057 = vmatpush1.bf16.msra.mxu0 0
    %1058 = vmatprep.subr.bf16.mxu0 0
    %1059 = vmatpush1.bf16.msra.mxu0 0
    %1060 = vmatprep.subr.bf16.mxu0 0
    %1061 = vmatpush1.bf16.msra.mxu0 0
    %1062 = vmatprep.subr.bf16.mxu0 0
    %1063 = vmatpush1.bf16.msra.mxu0 0
    %1064 = vmatprep.subr.bf16.mxu0 0
    %1065 = vmatpush1.bf16.msra.mxu0 0
    %1066 = vmatprep.subr.bf16.mxu0 0
    %1067 = vmatpush1.bf16.msra.mxu0 0
    %1068 = vmatprep.subr.bf16.mxu0 0
    %1069 = vmatpush1.bf16.msra.mxu0 0
    %1070 = vmatprep.subr.bf16.mxu0 0
    %1071 = vmatpush1.bf16.msra.mxu0 0
    %1072 = vmatprep.subr.bf16.mxu0 0
    %1073 = vmatpush1.bf16.msra.mxu0 0
    %1074 = vmatprep.subr.bf16.mxu0 0
    %1075 = vmatpush1.bf16.msra.mxu0 0
    %1076 = vmatprep.subr.bf16.mxu0 0
    %1077 = vmatpush1.bf16.msra.mxu0 0
    %1078 = vmatprep.mubr.bf16.mxu0 0
    %1079 = vmatmul.mubr.bf16.gmra.mrb[0].mxu0 %v1044
    %v1080 = vpop.f32.mrb[0].mxu0
    %v1081 = vadd.f32 0.0, %v1080
    %v1082 = vpop.f32.mrb[0].mxu0
    %v1083 = vpop.f32.mrb[0].mxu0
    %v1084 = vpop.f32.mrb[0].mxu0
    %1085 = vdwg.mxu0
    %vm1086 = vcmask 7168
    %v1087 = vsel %vm1086, %v780, -inf
    %v1088 = vrot.slane %v1087, 4
    %v1089 = vmax.f32 %v1087, %v1088
    %v1090 = vrot.slane %v1089, 2
    %v1091 = vmax.f32 %v1089, %v1090
    %v1092 = vrot.slane %v1091, 1
    %v1093 = vmax.f32 %v1091, %v1092
    %v1094 = vsel %vm1086, %v823, -inf
    %v1095 = vrot.slane %v1094, 4
    %v1096 = vmax.f32 %v1094, %v1095
    %v1097 = vrot.slane %v1096, 2
    %v1098 = vmax.f32 %v1096, %v1097
    %v1099 = vrot.slane %v1098, 1
    %v1100 = vmax.f32 %v1098, %v1099
    %v1101 = vsel %vm1086, %v866, -inf
    %v1102 = vrot.slane %v1101, 4
    %v1103 = vmax.f32 %v1101, %v1102
    %v1104 = vrot.slane %v1103, 2
    %v1105 = vmax.f32 %v1103, %v1104
    %v1106 = vrot.slane %v1105, 1
    %v1107 = vmax.f32 %v1105, %v1106
    %v1108 = vsel %vm1086, %v909, -inf
    %v1109 = vrot.slane %v1108, 4
    %v1110 = vmax.f32 %v1108, %v1109
    %v1111 = vrot.slane %v1110, 2
    %v1112 = vmax.f32 %v1110, %v1111
    %v1113 = vrot.slane %v1112, 1
    %v1114 = vmax.f32 %v1112, %v1113
    %v1115 = vsel %vm1086, %v952, -inf
    %v1116 = vrot.slane %v1115, 4
    %v1117 = vmax.f32 %v1115, %v1116
    %v1118 = vrot.slane %v1117, 2
    %v1119 = vmax.f32 %v1117, %v1118
    %v1120 = vrot.slane %v1119, 1
    %v1121 = vmax.f32 %v1119, %v1120
    %v1122 = vsel %vm1086, %v995, -inf
    %v1123 = vrot.slane %v1122, 4
    %v1124 = vmax.f32 %v1122, %v1123
    %v1125 = vrot.slane %v1124, 2
    %v1126 = vmax.f32 %v1124, %v1125
    %v1127 = vrot.slane %v1126, 1
    %v1128 = vmax.f32 %v1126, %v1127
    %v1129 = vsel %vm1086, %v1038, -inf
    %v1130 = vrot.slane %v1129, 4
    %v1131 = vmax.f32 %v1129, %v1130
    %v1132 = vrot.slane %v1131, 2
    %v1133 = vmax.f32 %v1131, %v1132
    %v1134 = vrot.slane %v1133, 1
    %v1135 = vmax.f32 %v1133, %v1134
    %v1136 = vsel %vm1086, %v1081, -inf
    %v1137 = vrot.slane %v1136, 4
    %v1138 = vmax.f32 %v1136, %v1137
    %v1139 = vrot.slane %v1138, 2
    %v1140 = vmax.f32 %v1138, %v1139
    %v1141 = vrot.slane %v1140, 1
    %v1142 = vmax.f32 %v1140, %v1141
    %v1143 = vsub.f32 %v780, %v1093
    %v1144 = vsub.f32 %v823, %v1100
    %v1145 = vsub.f32 %v866, %v1107
    %v1146 = vsub.f32 %v909, %v1114
    %v1147 = vsub.f32 %v952, %v1121
    %v1148 = vsub.f32 %v995, %v1128
    %v1149 = vsub.f32 %v1038, %v1135
    %v1150 = vsub.f32 %v1081, %v1142
    %v1151 = vmul.f32 %v1143, 1.442695
    %v1152 = vpow.pop %v1151
    %v1153 = vmul.f32 %v1144, 1.442695
    %v1154 = vpow.pop %v1153
    %v1155 = vmul.f32 %v1145, 1.442695
    %v1156 = vpow.pop %v1155
    %v1157 = vmul.f32 %v1146, 1.442695
    %v1158 = vpow.pop %v1157
    %v1159 = vmul.f32 %v1147, 1.442695
    %v1160 = vpow.pop %v1159
    %v1161 = vmul.f32 %v1148, 1.442695
    %v1162 = vpow.pop %v1161
    %v1163 = vmul.f32 %v1149, 1.442695
    %v1164 = vpow.pop %v1163
    %v1165 = vmul.f32 %v1150, 1.442695
    %v1166 = vpow.pop %v1165
    %s1168 = sor.u32 256, 32
    %1169 = vbcast.lane.b32.xlu0 %v515, %s1168
    %v1170 = vpop.permute.xlu0 %1169
    %s1172 = sor.u32 256, 32
    %1173 = vbcast.lane.b32.xlu0 %v523, %s1172
    %v1174 = vpop.permute.xlu0 %1173
    %s1176 = sor.u32 256, 32
    %1177 = vbcast.lane.b32.xlu0 %v531, %s1176
    %v1178 = vpop.permute.xlu0 %1177
    %s1180 = sor.u32 256, 32
    %1181 = vbcast.lane.b32.xlu0 %v539, %s1180
    %v1182 = vpop.permute.xlu0 %1181
    %s1184 = sor.u32 256, 32
    %1185 = vbcast.lane.b32.xlu0 %v547, %s1184
    %v1186 = vpop.permute.xlu0 %1185
    %s1188 = sor.u32 256, 32
    %1189 = vbcast.lane.b32.xlu0 %v555, %s1188
    %v1190 = vpop.permute.xlu0 %1189
    %s1192 = sor.u32 256, 32
    %1193 = vbcast.lane.b32.xlu0 %v563, %s1192
    %v1194 = vpop.permute.xlu0 %1193
    %s1196 = sor.u32 256, 32
    %1197 = vbcast.lane.b32.xlu0 %v571, %s1196
    %v1198 = vpop.permute.xlu0 %1197
    %v1199 = vmul.f32 %v1152, %v1170
    %v1200 = vmul.f32 %v1154, %v1174
    %v1201 = vmul.f32 %v1156, %v1178
    %v1202 = vmul.f32 %v1158, %v1182
    %v1203 = vmul.f32 %v1160, %v1186
    %v1204 = vmul.f32 %v1162, %v1190
    %v1205 = vmul.f32 %v1164, %v1194
    %v1206 = vmul.f32 %v1166, %v1198
    %v1207 = vsel %vm1086, %v1199, 0.0
    %v1208 = vrot.slane %v1207, 4
    %v1209 = vadd.f32 %v1207, %v1208
    %v1210 = vrot.slane %v1209, 2
    %v1211 = vadd.f32 %v1209, %v1210
    %v1212 = vrot.slane %v1211, 1
    %v1213 = vadd.f32 %v1211, %v1212
    %v1214 = vsel %vm1086, %v1200, 0.0
    %v1215 = vrot.slane %v1214, 4
    %v1216 = vadd.f32 %v1214, %v1215
    %v1217 = vrot.slane %v1216, 2
    %v1218 = vadd.f32 %v1216, %v1217
    %v1219 = vrot.slane %v1218, 1
    %v1220 = vadd.f32 %v1218, %v1219
    %v1221 = vsel %vm1086, %v1201, 0.0
    %v1222 = vrot.slane %v1221, 4
    %v1223 = vadd.f32 %v1221, %v1222
    %v1224 = vrot.slane %v1223, 2
    %v1225 = vadd.f32 %v1223, %v1224
    %v1226 = vrot.slane %v1225, 1
    %v1227 = vadd.f32 %v1225, %v1226
    %v1228 = vsel %vm1086, %v1202, 0.0
    %v1229 = vrot.slane %v1228, 4
    %v1230 = vadd.f32 %v1228, %v1229
    %v1231 = vrot.slane %v1230, 2
    %v1232 = vadd.f32 %v1230, %v1231
    %v1233 = vrot.slane %v1232, 1
    %v1234 = vadd.f32 %v1232, %v1233
    %v1235 = vsel %vm1086, %v1203, 0.0
    %v1236 = vrot.slane %v1235, 4
    %v1237 = vadd.f32 %v1235, %v1236
    %v1238 = vrot.slane %v1237, 2
    %v1239 = vadd.f32 %v1237, %v1238
    %v1240 = vrot.slane %v1239, 1
    %v1241 = vadd.f32 %v1239, %v1240
    %v1242 = vsel %vm1086, %v1204, 0.0
    %v1243 = vrot.slane %v1242, 4
    %v1244 = vadd.f32 %v1242, %v1243
    %v1245 = vrot.slane %v1244, 2
    %v1246 = vadd.f32 %v1244, %v1245
    %v1247 = vrot.slane %v1246, 1
    %v1248 = vadd.f32 %v1246, %v1247
    %v1249 = vsel %vm1086, %v1205, 0.0
    %v1250 = vrot.slane %v1249, 4
    %v1251 = vadd.f32 %v1249, %v1250
    %v1252 = vrot.slane %v1251, 2
    %v1253 = vadd.f32 %v1251, %v1252
    %v1254 = vrot.slane %v1253, 1
    %v1255 = vadd.f32 %v1253, %v1254
    %v1256 = vsel %vm1086, %v1206, 0.0
    %v1257 = vrot.slane %v1256, 4
    %v1258 = vadd.f32 %v1256, %v1257
    %v1259 = vrot.slane %v1258, 2
    %v1260 = vadd.f32 %v1258, %v1259
    %v1261 = vrot.slane %v1260, 1
    %v1262 = vadd.f32 %v1260, %v1261
    %v1263 = vrcp.pop %v1213
    %v1264 = vmul.f32 %v1199, %v1263
    %v1265 = vrcp.pop %v1220
    %v1266 = vmul.f32 %v1200, %v1265
    %v1267 = vrcp.pop %v1227
    %v1268 = vmul.f32 %v1201, %v1267
    %v1269 = vrcp.pop %v1234
    %v1270 = vmul.f32 %v1202, %v1269
    %v1271 = vrcp.pop %v1241
    %v1272 = vmul.f32 %v1203, %v1271
    %v1273 = vrcp.pop %v1248
    %v1274 = vmul.f32 %v1204, %v1273
    %v1275 = vrcp.pop %v1255
    %v1276 = vmul.f32 %v1205, %v1275
    %v1277 = vrcp.pop %v1262
    %v1278 = vmul.f32 %v1206, %v1277
    %v1279 = vld [vmem:[%s1] sm:$0xf]
    %v1280 = vld [vmem:[%s1 + $0x4] sm:$0xf]
    %v1281 = vld [vmem:[%s1 + $0x8] sm:$0xf]
    %v1282 = vld [vmem:[%s1 + $0xc] sm:$0xf]
    %v1283 = vld [vmem:[%s1 + $0x10] sm:$0xf]
    %v1284 = vld [vmem:[%s1 + $0x14] sm:$0xf]
    %v1285 = vld [vmem:[%s1 + $0x18] sm:$0xf]
    %v1286 = vld [vmem:[%s1 + $0x1c] sm:$0xf]
    %v1287 = vunpack.c.l.bf16 %v1279
    %v1288 = vunpack.c.l.bf16 %v1280
    %v1289 = vunpack.c.l.bf16 %v1281
    %v1290 = vunpack.c.l.bf16 %v1282
    %v1291 = vunpack.c.l.bf16 %v1283
    %v1292 = vunpack.c.l.bf16 %v1284
    %v1293 = vunpack.c.l.bf16 %v1285
    %v1294 = vunpack.c.l.bf16 %v1286
    %1296 = vset.pattern.permute.xlu0 0
    %1297 = vperm.xlu0 %1296, %v1264
    %v1298 = vpop.permute.xlu0 %1297
    %1301 = vset.pattern.permute.xlu0 0
    %1302 = vperm.xlu0 %1301, %v1266
    %v1303 = vpop.permute.xlu0 %1302
    %1306 = vset.pattern.permute.xlu0 0
    %1307 = vperm.xlu0 %1306, %v1268
    %v1308 = vpop.permute.xlu0 %1307
    %1311 = vset.pattern.permute.xlu0 0
    %1312 = vperm.xlu0 %1311, %v1270
    %v1313 = vpop.permute.xlu0 %1312
    %1316 = vset.pattern.permute.xlu0 0
    %1317 = vperm.xlu0 %1316, %v1272
    %v1318 = vpop.permute.xlu0 %1317
    %1321 = vset.pattern.permute.xlu0 0
    %1322 = vperm.xlu0 %1321, %v1274
    %v1323 = vpop.permute.xlu0 %1322
    %1326 = vset.pattern.permute.xlu0 0
    %1327 = vperm.xlu0 %1326, %v1276
    %v1328 = vpop.permute.xlu0 %1327
    %1331 = vset.pattern.permute.xlu0 0
    %1332 = vperm.xlu0 %1331, %v1278
    %v1333 = vpop.permute.xlu0 %1332
    %v1335 = vmul.f32 %v1298, %v1287
    %v1336 = vmul.f32 %v1303, %v1288
    %v1337 = vmul.f32 %v1308, %v1289
    %v1338 = vmul.f32 %v1313, %v1290
    %v1339 = vmul.f32 %v1318, %v1291
    %v1340 = vmul.f32 %v1323, %v1292
    %v1341 = vmul.f32 %v1328, %v1293
    %v1342 = vmul.f32 %v1333, %v1294
    %v1343 = vsel %vm161, %v1335, 0.0
    %v1344 = vrot.slane %v1343, 4
    %v1345 = vadd.f32 %v1343, %v1344
    %v1346 = vrot.slane %v1345, 2
    %v1347 = vadd.f32 %v1345, %v1346
    %v1348 = vrot.slane %v1347, 1
    %v1349 = vadd.f32 %v1347, %v1348
    %v1350 = vsel %vm161, %v1336, 0.0
    %v1351 = vrot.slane %v1350, 4
    %v1352 = vadd.f32 %v1350, %v1351
    %v1353 = vrot.slane %v1352, 2
    %v1354 = vadd.f32 %v1352, %v1353
    %v1355 = vrot.slane %v1354, 1
    %v1356 = vadd.f32 %v1354, %v1355
    %v1357 = vsel %vm161, %v1337, 0.0
    %v1358 = vrot.slane %v1357, 4
    %v1359 = vadd.f32 %v1357, %v1358
    %v1360 = vrot.slane %v1359, 2
    %v1361 = vadd.f32 %v1359, %v1360
    %v1362 = vrot.slane %v1361, 1
    %v1363 = vadd.f32 %v1361, %v1362
    %v1364 = vsel %vm161, %v1338, 0.0
    %v1365 = vrot.slane %v1364, 4
    %v1366 = vadd.f32 %v1364, %v1365
    %v1367 = vrot.slane %v1366, 2
    %v1368 = vadd.f32 %v1366, %v1367
    %v1369 = vrot.slane %v1368, 1
    %v1370 = vadd.f32 %v1368, %v1369
    %v1371 = vsel %vm161, %v1339, 0.0
    %v1372 = vrot.slane %v1371, 4
    %v1373 = vadd.f32 %v1371, %v1372
    %v1374 = vrot.slane %v1373, 2
    %v1375 = vadd.f32 %v1373, %v1374
    %v1376 = vrot.slane %v1375, 1
    %v1377 = vadd.f32 %v1375, %v1376
    %v1378 = vsel %vm161, %v1340, 0.0
    %v1379 = vrot.slane %v1378, 4
    %v1380 = vadd.f32 %v1378, %v1379
    %v1381 = vrot.slane %v1380, 2
    %v1382 = vadd.f32 %v1380, %v1381
    %v1383 = vrot.slane %v1382, 1
    %v1384 = vadd.f32 %v1382, %v1383
    %v1385 = vsel %vm161, %v1341, 0.0
    %v1386 = vrot.slane %v1385, 4
    %v1387 = vadd.f32 %v1385, %v1386
    %v1388 = vrot.slane %v1387, 2
    %v1389 = vadd.f32 %v1387, %v1388
    %v1390 = vrot.slane %v1389, 1
    %v1391 = vadd.f32 %v1389, %v1390
    %v1392 = vsel %vm161, %v1342, 0.0
    %v1393 = vrot.slane %v1392, 4
    %v1394 = vadd.f32 %v1392, %v1393
    %v1395 = vrot.slane %v1394, 2
    %v1396 = vadd.f32 %v1394, %v1395
    %v1397 = vrot.slane %v1396, 1
    %v1398 = vadd.f32 %v1396, %v1397
    %v1399 = vadd.f32 %v1264, 0.0
    %v1400 = vadd.f32 %v1266, 0.0
    %v1401 = vadd.f32 %v1268, 0.0
    %v1402 = vadd.f32 %v1270, 0.0
    %v1403 = vadd.f32 %v1272, 0.0
    %v1404 = vadd.f32 %v1274, 0.0
    %v1405 = vadd.f32 %v1276, 0.0
    %v1406 = vadd.f32 %v1278, 0.0
    %1415 = vset.pattern.permute.xlu0 0
    %1416 = vperm.xlu0 %1415, %v1399
    %v1417 = vpop.permute.xlu0 %1416
    %1418 = vset.pattern.permute.xlu0 0
    %1419 = vperm.xlu0 %1418, %v1400
    %v1420 = vpop.permute.xlu0 %1419
    %1421 = vset.pattern.permute.xlu0 0
    %1422 = vperm.xlu0 %1421, %v1401
    %v1423 = vpop.permute.xlu0 %1422
    %1424 = vset.pattern.permute.xlu0 0
    %1425 = vperm.xlu0 %1424, %v1402
    %v1426 = vpop.permute.xlu0 %1425
    %1427 = vset.pattern.permute.xlu0 0
    %1428 = vperm.xlu0 %1427, %v1403
    %v1429 = vpop.permute.xlu0 %1428
    %1430 = vset.pattern.permute.xlu0 0
    %1431 = vperm.xlu0 %1430, %v1404
    %v1432 = vpop.permute.xlu0 %1431
    %1433 = vset.pattern.permute.xlu0 0
    %1434 = vperm.xlu0 %1433, %v1405
    %v1435 = vpop.permute.xlu0 %1434
    %1436 = vset.pattern.permute.xlu0 0
    %1437 = vperm.xlu0 %1436, %v1406
    %v1438 = vpop.permute.xlu0 %1437
    %v1439 = vlaneseq
    %v1440 = vand.u32 %v1439, 127
    %v1441 = vadd.s32 %v1440, 4294967256
    %v1442 = vlaneseq
    %v1443 = vshrl.u32 %v1442, 7
    %v1444 = vsub.s32 %v1441, %v1443
    %v1445 = vrot.slane %v1417, %v1444
    %v1446 = vlaneseq
    %v1447 = vshrl.u32 %v1446, 7
    %v1448 = vsub.s32 %v1441, %v1447
    %v1449 = vrot.slane %v1420, %v1448
    %v1450 = vlaneseq
    %v1451 = vshrl.u32 %v1450, 7
    %v1452 = vsub.s32 %v1441, %v1451
    %v1453 = vrot.slane %v1423, %v1452
    %v1454 = vlaneseq
    %v1455 = vshrl.u32 %v1454, 7
    %v1456 = vsub.s32 %v1441, %v1455
    %v1457 = vrot.slane %v1426, %v1456
    %v1458 = vlaneseq
    %v1459 = vshrl.u32 %v1458, 7
    %v1460 = vsub.s32 %v1441, %v1459
    %v1461 = vrot.slane %v1429, %v1460
    %v1462 = vlaneseq
    %v1463 = vshrl.u32 %v1462, 7
    %v1464 = vsub.s32 %v1441, %v1463
    %v1465 = vrot.slane %v1432, %v1464
    %v1466 = vlaneseq
    %v1467 = vshrl.u32 %v1466, 7
    %v1468 = vsub.s32 %v1441, %v1467
    %v1469 = vrot.slane %v1435, %v1468
    %v1470 = vlaneseq
    %v1471 = vshrl.u32 %v1470, 7
    %v1472 = vsub.s32 %v1441, %v1471
    %v1473 = vrot.slane %v1438, %v1472
    %vm1474 = vcmask 1041409
    %v1475 = vsel %vm1474, %v1449, %v1445
    %vm1476 = vcmask 1042434
    %v1477 = vsel %vm1476, %v1453, %v1475
    %vm1478 = vcmask 1043459
    %v1479 = vsel %vm1478, %v1457, %v1477
    %vm1480 = vcmask 1044484
    %v1481 = vsel %vm1480, %v1461, %v1479
    %vm1482 = vcmask 1045509
    %v1483 = vsel %vm1482, %v1465, %v1481
    %vm1484 = vcmask 1046534
    %v1485 = vsel %vm1484, %v1469, %v1483
    %vm1486 = vcmask 1047559
    %v1487 = vsel %vm1486, %v1473, %v1485
    %v1489 = vadd.f32 %v49, %v1487
    %v1490 = vld [vmem:[%s8] sm:$0xf]
    %v1491 = vld [vmem:[%s8 + $0x4] sm:$0xf]
    %v1492 = vld [vmem:[%s8 + $0x8] sm:$0xf]
    %v1493 = vld [vmem:[%s8 + $0xc] sm:$0xf]
    %v1494 = vld [vmem:[%s8 + $0x10] sm:$0xf]
    %v1495 = vld [vmem:[%s8 + $0x14] sm:$0xf]
    %v1496 = vld [vmem:[%s8 + $0x18] sm:$0xf]
    %v1497 = vld [vmem:[%s8 + $0x1c] sm:$0xf]
    %v1498 = vpack.c.bf16 %v1349, %v1349
    %v1499 = vpack.c.bf16 %v1356, %v1356
    %v1500 = vpack.c.bf16 %v1363, %v1363
    %v1501 = vpack.c.bf16 %v1370, %v1370
    %v1502 = vpack.c.bf16 %v1377, %v1377
    %v1503 = vpack.c.bf16 %v1384, %v1384
    %v1504 = vpack.c.bf16 %v1391, %v1391
    %v1505 = vpack.c.bf16 %v1398, %v1398
    %v1506 = vld [vmem:[%s8 + $0x20] sm:$0xf]
    %v1507 = vld [vmem:[%s8 + $0x24] sm:$0xf]
    %v1508 = vld [vmem:[%s8 + $0x28] sm:$0xf]
    %v1509 = vld [vmem:[%s8 + $0x2c] sm:$0xf]
    %v1514 = vunpack.c.l.b16 %v1506
    %v1515 = vunpack.c.l.b16 %v1507
    %v1516 = vunpack.c.l.b16 %v1508
    %v1517 = vunpack.c.l.b16 %v1509
    %v1518 = vpack.c.b16 %v1515, %v1514
    %v1519 = vpack.c.b16 %v1517, %v1516
    %1522 = vmatprep.subr.bf16.mxu0 0
    %1523 = vmatpush1.bf16.msra.mxu0 %v1518
    %1524 = vmatprep.subr.bf16.mxu0 0
    %1525 = vmatpush1.bf16.msra.mxu0 %v1519
    %1526 = vmatprep.subr.bf16.mxu0 0
    %1527 = vmatpush1.bf16.msra.mxu0 0
    %1528 = vmatprep.subr.bf16.mxu0 0
    %1529 = vmatpush1.bf16.msra.mxu0 0
    %1530 = vmatprep.subr.bf16.mxu0 0
    %1531 = vmatpush1.bf16.msra.mxu0 0
    %1532 = vmatprep.subr.bf16.mxu0 0
    %1533 = vmatpush1.bf16.msra.mxu0 0
    %1534 = vmatprep.subr.bf16.mxu0 0
    %1535 = vmatpush1.bf16.msra.mxu0 0
    %1536 = vmatprep.subr.bf16.mxu0 0
    %1537 = vmatpush1.bf16.msra.mxu0 0
    %1538 = vmatprep.subr.bf16.mxu0 0
    %1539 = vmatpush1.bf16.msra.mxu0 0
    %1540 = vmatprep.subr.bf16.mxu0 0
    %1541 = vmatpush1.bf16.msra.mxu0 0
    %1542 = vmatprep.subr.bf16.mxu0 0
    %1543 = vmatpush1.bf16.msra.mxu0 0
    %1544 = vmatprep.subr.bf16.mxu0 0
    %1545 = vmatpush1.bf16.msra.mxu0 0
    %1546 = vmatprep.subr.bf16.mxu0 0
    %1547 = vmatpush1.bf16.msra.mxu0 0
    %1548 = vmatprep.subr.bf16.mxu0 0
    %1549 = vmatpush1.bf16.msra.mxu0 0
    %1550 = vmatprep.subr.bf16.mxu0 0
    %1551 = vmatpush1.bf16.msra.mxu0 0
    %1552 = vmatprep.subr.bf16.mxu0 0
    %1553 = vmatpush1.bf16.msra.mxu0 0
    %1554 = vmatprep.mubr.bf16.mxu0 0
    %1555 = vmatmul.mubr.bf16.gmra.mrb[0].mxu0 %v449
    %v1556 = vpop.f32.mrb[0].mxu0
    %v1557 = vadd.f32 0.0, %v1556
    %v1558 = vpop.f32.mrb[0].mxu0
    %v1559 = vpop.f32.mrb[0].mxu0
    %v1560 = vpop.f32.mrb[0].mxu0
    %1561 = vdwg.mxu0
    %v1570 = vunpack.c.l.b16 %v1498
    %v1571 = vunpack.c.l.b16 %v1499
    %v1572 = vunpack.c.l.b16 %v1500
    %v1573 = vunpack.c.l.b16 %v1501
    %v1574 = vunpack.c.l.b16 %v1502
    %v1575 = vunpack.c.l.b16 %v1503
    %v1576 = vunpack.c.l.b16 %v1504
    %v1577 = vunpack.c.l.b16 %v1505
    %v1578 = vsel %vm1474, %v1571, %v1570
    %v1579 = vsel %vm1476, %v1572, %v1578
    %v1580 = vsel %vm1478, %v1573, %v1579
    %v1581 = vsel %vm1480, %v1574, %v1580
    %v1582 = vsel %vm1482, %v1575, %v1581
    %v1583 = vsel %vm1484, %v1576, %v1582
    %v1584 = vsel %vm1486, %v1577, %v1583
    %v1585 = vpack.c.b16 %v1584, %v1584
    %v1594 = vunpack.c.l.b16 %v1490
    %v1595 = vunpack.c.l.b16 %v1491
    %v1596 = vunpack.c.l.b16 %v1492
    %v1597 = vunpack.c.l.b16 %v1493
    %v1598 = vunpack.c.l.b16 %v1494
    %v1599 = vunpack.c.l.b16 %v1495
    %v1600 = vunpack.c.l.b16 %v1496
    %v1601 = vunpack.c.l.b16 %v1497
    %v1602 = vpack.c.b16 %v1595, %v1594
    %v1603 = vpack.c.b16 %v1597, %v1596
    %v1604 = vpack.c.b16 %v1599, %v1598
    %v1605 = vpack.c.b16 %v1601, %v1600
    %v1611 = vsel %vm161, %v1585, 0
    %1613 = vmatprep.subr.bf16.mxu0 0
    %1614 = vmatpush1.bf16.msra.mxu0 %v1602
    %1615 = vmatprep.subr.bf16.mxu0 0
    %1616 = vmatpush1.bf16.msra.mxu0 %v1603
    %1617 = vmatprep.subr.bf16.mxu0 0
    %1618 = vmatpush1.bf16.msra.mxu0 %v1604
    %1619 = vmatprep.subr.bf16.mxu0 0
    %1620 = vmatpush1.bf16.msra.mxu0 %v1605
    %1621 = vmatprep.subr.bf16.mxu0 0
    %1622 = vmatpush1.bf16.msra.mxu0 0
    %1623 = vmatprep.subr.bf16.mxu0 0
    %1624 = vmatpush1.bf16.msra.mxu0 0
    %1625 = vmatprep.subr.bf16.mxu0 0
    %1626 = vmatpush1.bf16.msra.mxu0 0
    %1627 = vmatprep.subr.bf16.mxu0 0
    %1628 = vmatpush1.bf16.msra.mxu0 0
    %1629 = vmatprep.subr.bf16.mxu0 0
    %1630 = vmatpush1.bf16.msra.mxu0 0
    %1631 = vmatprep.subr.bf16.mxu0 0
    %1632 = vmatpush1.bf16.msra.mxu0 0
    %1633 = vmatprep.subr.bf16.mxu0 0
    %1634 = vmatpush1.bf16.msra.mxu0 0
    %1635 = vmatprep.subr.bf16.mxu0 0
    %1636 = vmatpush1.bf16.msra.mxu0 0
    %1637 = vmatprep.subr.bf16.mxu0 0
    %1638 = vmatpush1.bf16.msra.mxu0 0
    %1639 = vmatprep.subr.bf16.mxu0 0
    %1640 = vmatpush1.bf16.msra.mxu0 0
    %1641 = vmatprep.subr.bf16.mxu0 0
    %1642 = vmatpush1.bf16.msra.mxu0 0
    %1643 = vmatprep.subr.bf16.mxu0 0
    %1644 = vmatpush1.bf16.msra.mxu0 0
    %1645 = vmatprep.mubr.bf16.mxu0 0
    %1646 = vmatmul.mubr.bf16.gmra.mrb[0].mxu0 %v1611
    %v1647 = vpop.f32.mrb[0].mxu0
    %v1648 = vadd.f32 %v1557, %v1647
    %v1649 = vpop.f32.mrb[0].mxu0
    %v1650 = vpop.f32.mrb[0].mxu0
    %v1651 = vpop.f32.mrb[0].mxu0
    %1652 = vdwg.mxu0
    %v1653 = vld [vmem:[%s8 + $0x30] sm:$0xf]
    %v1654 = vld [vmem:[%s8 + $0x34] sm:$0xf]
    %v1655 = vld [vmem:[%s8 + $0x38] sm:$0xf]
    %v1656 = vld [vmem:[%s8 + $0x3c] sm:$0xf]
    %v1661 = vunpack.c.l.b16 %v1653
    %v1662 = vunpack.c.l.b16 %v1654
    %v1663 = vunpack.c.l.b16 %v1655
    %v1664 = vunpack.c.l.b16 %v1656
    %v1665 = vpack.c.b16 %v1662, %v1661
    %v1666 = vpack.c.b16 %v1664, %v1663
    %1669 = vmatprep.subr.bf16.mxu0 0
    %1670 = vmatpush1.bf16.msra.mxu0 %v1665
    %1671 = vmatprep.subr.bf16.mxu0 0
    %1672 = vmatpush1.bf16.msra.mxu0 %v1666
    %1673 = vmatprep.subr.bf16.mxu0 0
    %1674 = vmatpush1.bf16.msra.mxu0 0
    %1675 = vmatprep.subr.bf16.mxu0 0
    %1676 = vmatpush1.bf16.msra.mxu0 0
    %1677 = vmatprep.subr.bf16.mxu0 0
    %1678 = vmatpush1.bf16.msra.mxu0 0
    %1679 = vmatprep.subr.bf16.mxu0 0
    %1680 = vmatpush1.bf16.msra.mxu0 0
    %1681 = vmatprep.subr.bf16.mxu0 0
    %1682 = vmatpush1.bf16.msra.mxu0 0
    %1683 = vmatprep.subr.bf16.mxu0 0
    %1684 = vmatpush1.bf16.msra.mxu0 0
    %1685 = vmatprep.subr.bf16.mxu0 0
    %1686 = vmatpush1.bf16.msra.mxu0 0
    %1687 = vmatprep.subr.bf16.mxu0 0
    %1688 = vmatpush1.bf16.msra.mxu0 0
    %1689 = vmatprep.subr.bf16.mxu0 0
    %1690 = vmatpush1.bf16.msra.mxu0 0
    %1691 = vmatprep.subr.bf16.mxu0 0
    %1692 = vmatpush1.bf16.msra.mxu0 0
    %1693 = vmatprep.subr.bf16.mxu0 0
    %1694 = vmatpush1.bf16.msra.mxu0 0
    %1695 = vmatprep.subr.bf16.mxu0 0
    %1696 = vmatpush1.bf16.msra.mxu0 0
    %1697 = vmatprep.subr.bf16.mxu0 0
    %1698 = vmatpush1.bf16.msra.mxu0 0
    %1699 = vmatprep.subr.bf16.mxu0 0
    %1700 = vmatpush1.bf16.msra.mxu0 0
    %1701 = vmatprep.mubr.bf16.mxu0 0
    %1702 = vmatmul.mubr.bf16.gmra.mrb[0].mxu0 %v391
    %v1703 = vpop.f32.mrb[0].mxu0
    %v1704 = vadd.f32 0.0, %v1703
    %v1705 = vpop.f32.mrb[0].mxu0
    %v1706 = vpop.f32.mrb[0].mxu0
    %v1707 = vpop.f32.mrb[0].mxu0
    %1708 = vdwg.mxu0
    %v1709 = vadd.f32 %v1648, %v1704
    %v1710 = vld [vmem:[%s8 + $0x40] sm:$0xf]
    %v1711 = vld [vmem:[%s8 + $0x44] sm:$0xf]
    %v1712 = vld [vmem:[%s8 + $0x48] sm:$0xf]
    %v1713 = vld [vmem:[%s8 + $0x4c] sm:$0xf]
    %v1718 = vunpack.c.l.b16 %v1710
    %v1719 = vunpack.c.l.b16 %v1711
    %v1720 = vunpack.c.l.b16 %v1712
    %v1721 = vunpack.c.l.b16 %v1713
    %v1722 = vpack.c.b16 %v1719, %v1718
    %v1723 = vpack.c.b16 %v1721, %v1720
    %1726 = vmatprep.subr.bf16.mxu0 0
    %1727 = vmatpush1.bf16.msra.mxu0 %v1722
    %1728 = vmatprep.subr.bf16.mxu0 0
    %1729 = vmatpush1.bf16.msra.mxu0 %v1723
    %1730 = vmatprep.subr.bf16.mxu0 0
    %1731 = vmatpush1.bf16.msra.mxu0 0
    %1732 = vmatprep.subr.bf16.mxu0 0
    %1733 = vmatpush1.bf16.msra.mxu0 0
    %1734 = vmatprep.subr.bf16.mxu0 0
    %1735 = vmatpush1.bf16.msra.mxu0 0
    %1736 = vmatprep.subr.bf16.mxu0 0
    %1737 = vmatpush1.bf16.msra.mxu0 0
    %1738 = vmatprep.subr.bf16.mxu0 0
    %1739 = vmatpush1.bf16.msra.mxu0 0
    %1740 = vmatprep.subr.bf16.mxu0 0
    %1741 = vmatpush1.bf16.msra.mxu0 0
    %1742 = vmatprep.subr.bf16.mxu0 0
    %1743 = vmatpush1.bf16.msra.mxu0 0
    %1744 = vmatprep.subr.bf16.mxu0 0
    %1745 = vmatpush1.bf16.msra.mxu0 0
    %1746 = vmatprep.subr.bf16.mxu0 0
    %1747 = vmatpush1.bf16.msra.mxu0 0
    %1748 = vmatprep.subr.bf16.mxu0 0
    %1749 = vmatpush1.bf16.msra.mxu0 0
    %1750 = vmatprep.subr.bf16.mxu0 0
    %1751 = vmatpush1.bf16.msra.mxu0 0
    %1752 = vmatprep.subr.bf16.mxu0 0
    %1753 = vmatpush1.bf16.msra.mxu0 0
    %1754 = vmatprep.subr.bf16.mxu0 0
    %1755 = vmatpush1.bf16.msra.mxu0 0
    %1756 = vmatprep.subr.bf16.mxu0 0
    %1757 = vmatpush1.bf16.msra.mxu0 0
    %1758 = vmatprep.mubr.bf16.mxu0 0
    %1759 = vmatmul.mubr.bf16.gmra.mrb[0].mxu0 %v290
    %v1760 = vpop.f32.mrb[0].mxu0
    %v1761 = vadd.f32 0.0, %v1760
    %v1762 = vpop.f32.mrb[0].mxu0
    %v1763 = vpop.f32.mrb[0].mxu0
    %v1764 = vpop.f32.mrb[0].mxu0
    %1765 = vdwg.mxu0
    %v1766 = vadd.f32 %v1709, %v1761
    %v1767 = vlaneseq
    %v1768 = vshrl.u32 %v1767, 7
    %v1769 = vsub.s32 0, %v1768
    %v1770 = vrot.slane %v57, %v1769
    %v1771 = vadd.f32 %v1766, %v1770
    %v1772 = vsub.f32 0.0, %v1771
    %v1773 = vmul.f32 %v1772, 1.442695
    %v1774 = vpow.pop %v1773
    %v1775 = vadd.f32 %v1774, 1.0
    %v1776 = vrcp.pop %v1775
    %v1777 = vmul.f32 1.0, %v1776
    %v1778 = vld [vmem:[%s9] sm:$0xf]
    %v1779 = vld [vmem:[%s9 + $0x4] sm:$0xf]
    %v1780 = vld [vmem:[%s9 + $0x8] sm:$0xf]
    %v1781 = vld [vmem:[%s9 + $0xc] sm:$0xf]
    %v1782 = vld [vmem:[%s9 + $0x10] sm:$0xf]
    %v1783 = vld [vmem:[%s9 + $0x14] sm:$0xf]
    %v1784 = vld [vmem:[%s9 + $0x18] sm:$0xf]
    %v1785 = vld [vmem:[%s9 + $0x1c] sm:$0xf]
    %v1786 = vld [vmem:[%s9 + $0x20] sm:$0xf]
    %v1787 = vld [vmem:[%s9 + $0x24] sm:$0xf]
    %v1788 = vld [vmem:[%s9 + $0x28] sm:$0xf]
    %v1789 = vld [vmem:[%s9 + $0x2c] sm:$0xf]
    %v1798 = vunpack.c.l.b16 %v1782
    %v1799 = vunpack.c.l.b16 %v1783
    %v1800 = vunpack.c.l.b16 %v1784
    %v1801 = vunpack.c.l.b16 %v1785
    %v1802 = vunpack.c.l.b16 %v1786
    %v1803 = vunpack.c.l.b16 %v1787
    %v1804 = vunpack.c.l.b16 %v1788
    %v1805 = vunpack.c.l.b16 %v1789
    %v1806 = vpack.c.b16 %v1799, %v1798
    %v1807 = vpack.c.b16 %v1801, %v1800
    %v1808 = vpack.c.b16 %v1803, %v1802
    %v1809 = vpack.c.b16 %v1805, %v1804
    %1814 = vmatprep.subr.bf16.mxu0 0
    %1815 = vmatpush1.bf16.msra.mxu0 %v1806
    %1816 = vmatprep.subr.bf16.mxu0 0
    %1817 = vmatpush1.bf16.msra.mxu0 %v1807
    %1818 = vmatprep.subr.bf16.mxu0 0
    %1819 = vmatpush1.bf16.msra.mxu0 %v1808
    %1820 = vmatprep.subr.bf16.mxu0 0
    %1821 = vmatpush1.bf16.msra.mxu0 %v1809
    %1822 = vmatprep.subr.bf16.mxu0 0
    %1823 = vmatpush1.bf16.msra.mxu0 0
    %1824 = vmatprep.subr.bf16.mxu0 0
    %1825 = vmatpush1.bf16.msra.mxu0 0
    %1826 = vmatprep.subr.bf16.mxu0 0
    %1827 = vmatpush1.bf16.msra.mxu0 0
    %1828 = vmatprep.subr.bf16.mxu0 0
    %1829 = vmatpush1.bf16.msra.mxu0 0
    %1830 = vmatprep.subr.bf16.mxu0 0
    %1831 = vmatpush1.bf16.msra.mxu0 0
    %1832 = vmatprep.subr.bf16.mxu0 0
    %1833 = vmatpush1.bf16.msra.mxu0 0
    %1834 = vmatprep.subr.bf16.mxu0 0
    %1835 = vmatpush1.bf16.msra.mxu0 0
    %1836 = vmatprep.subr.bf16.mxu0 0
    %1837 = vmatpush1.bf16.msra.mxu0 0
    %1838 = vmatprep.subr.bf16.mxu0 0
    %1839 = vmatpush1.bf16.msra.mxu0 0
    %1840 = vmatprep.subr.bf16.mxu0 0
    %1841 = vmatpush1.bf16.msra.mxu0 0
    %1842 = vmatprep.subr.bf16.mxu0 0
    %1843 = vmatpush1.bf16.msra.mxu0 0
    %1844 = vmatprep.subr.bf16.mxu0 0
    %1845 = vmatpush1.bf16.msra.mxu0 0
    %1846 = vmatprep.mubr.bf16.mxu0 0
    %1847 = vmatmul.mubr.bf16.gmra.mrb[0].mxu0 %v1611
    %v1848 = vpop.f32.mrb[0].mxu0
    %v1849 = vadd.f32 0.0, %v1848
    %v1850 = vpop.f32.mrb[0].mxu0
    %v1851 = vpop.f32.mrb[0].mxu0
    %v1852 = vpop.f32.mrb[0].mxu0
    %1853 = vdwg.mxu0
    %v1858 = vunpack.c.l.b16 %v1778
    %v1859 = vunpack.c.l.b16 %v1779
    %v1860 = vunpack.c.l.b16 %v1780
    %v1861 = vunpack.c.l.b16 %v1781
    %v1862 = vpack.c.b16 %v1859, %v1858
    %v1863 = vpack.c.b16 %v1861, %v1860
    %1866 = vmatprep.subr.bf16.mxu0 0
    %1867 = vmatpush1.bf16.msra.mxu0 %v1862
    %1868 = vmatprep.subr.bf16.mxu0 0
    %1869 = vmatpush1.bf16.msra.mxu0 %v1863
    %1870 = vmatprep.subr.bf16.mxu0 0
    %1871 = vmatpush1.bf16.msra.mxu0 0
    %1872 = vmatprep.subr.bf16.mxu0 0
    %1873 = vmatpush1.bf16.msra.mxu0 0
    %1874 = vmatprep.subr.bf16.mxu0 0
    %1875 = vmatpush1.bf16.msra.mxu0 0
    %1876 = vmatprep.subr.bf16.mxu0 0
    %1877 = vmatpush1.bf16.msra.mxu0 0
    %1878 = vmatprep.subr.bf16.mxu0 0
    %1879 = vmatpush1.bf16.msra.mxu0 0
    %1880 = vmatprep.subr.bf16.mxu0 0
    %1881 = vmatpush1.bf16.msra.mxu0 0
    %1882 = vmatprep.subr.bf16.mxu0 0
    %1883 = vmatpush1.bf16.msra.mxu0 0
    %1884 = vmatprep.subr.bf16.mxu0 0
    %1885 = vmatpush1.bf16.msra.mxu0 0
    %1886 = vmatprep.subr.bf16.mxu0 0
    %1887 = vmatpush1.bf16.msra.mxu0 0
    %1888 = vmatprep.subr.bf16.mxu0 0
    %1889 = vmatpush1.bf16.msra.mxu0 0
    %1890 = vmatprep.subr.bf16.mxu0 0
    %1891 = vmatpush1.bf16.msra.mxu0 0
    %1892 = vmatprep.subr.bf16.mxu0 0
    %1893 = vmatpush1.bf16.msra.mxu0 0
    %1894 = vmatprep.subr.bf16.mxu0 0
    %1895 = vmatpush1.bf16.msra.mxu0 0
    %1896 = vmatprep.subr.bf16.mxu0 0
    %1897 = vmatpush1.bf16.msra.mxu0 0
    %1898 = vmatprep.mubr.bf16.mxu0 0
    %1899 = vmatmul.mubr.bf16.gmra.mrb[0].mxu0 %v449
    %v1900 = vpop.f32.mrb[0].mxu0
    %v1901 = vadd.f32 %v1849, %v1900
    %v1902 = vpop.f32.mrb[0].mxu0
    %v1903 = vpop.f32.mrb[0].mxu0
    %v1904 = vpop.f32.mrb[0].mxu0
    %1905 = vdwg.mxu0
    %v1906 = vlaneseq
    %v1907 = vshrl.u32 %v1906, 7
    %v1908 = vsub.s32 0, %v1907
    %v1909 = vrot.slane %v55, %v1908
    %v1910 = vadd.f32 %v1901, %v1909
    %v1911 = vld [vmem:[%s10] sm:$0xf]
    %v1912 = vld [vmem:[%s10 + $0x4] sm:$0xf]
    %v1913 = vld [vmem:[%s10 + $0x8] sm:$0xf]
    %v1914 = vld [vmem:[%s10 + $0xc] sm:$0xf]
    %v1915 = vpack.c.bf16 %v1910, %v1910
    %v1916 = vlaneseq
    %v1917 = vshrl.u32 %v1916, 7
    %v1918 = vsub.s32 0, %v1917
    %v1919 = vrot.slane %v56, %v1918
    %v1924 = vunpack.c.l.b16 %v1911
    %v1925 = vunpack.c.l.b16 %v1912
    %v1926 = vunpack.c.l.b16 %v1913
    %v1927 = vunpack.c.l.b16 %v1914
    %v1928 = vpack.c.b16 %v1925, %v1924
    %v1929 = vpack.c.b16 %v1927, %v1926
    %v1933 = vsel %vm85, %v1915, 0
    %1935 = vmatprep.subr.bf16.mxu0 0
    %1936 = vmatpush1.bf16.msra.mxu0 %v1928
    %1937 = vmatprep.subr.bf16.mxu0 0
    %1938 = vmatpush1.bf16.msra.mxu0 %v1929
    %1939 = vmatprep.subr.bf16.mxu0 0
    %1940 = vmatpush1.bf16.msra.mxu0 0
    %1941 = vmatprep.subr.bf16.mxu0 0
    %1942 = vmatpush1.bf16.msra.mxu0 0
    %1943 = vmatprep.subr.bf16.mxu0 0
    %1944 = vmatpush1.bf16.msra.mxu0 0
    %1945 = vmatprep.subr.bf16.mxu0 0
    %1946 = vmatpush1.bf16.msra.mxu0 0
    %1947 = vmatprep.subr.bf16.mxu0 0
    %1948 = vmatpush1.bf16.msra.mxu0 0
    %1949 = vmatprep.subr.bf16.mxu0 0
    %1950 = vmatpush1.bf16.msra.mxu0 0
    %1951 = vmatprep.subr.bf16.mxu0 0
    %1952 = vmatpush1.bf16.msra.mxu0 0
    %1953 = vmatprep.subr.bf16.mxu0 0
    %1954 = vmatpush1.bf16.msra.mxu0 0
    %1955 = vmatprep.subr.bf16.mxu0 0
    %1956 = vmatpush1.bf16.msra.mxu0 0
    %1957 = vmatprep.subr.bf16.mxu0 0
    %1958 = vmatpush1.bf16.msra.mxu0 0
    %1959 = vmatprep.subr.bf16.mxu0 0
    %1960 = vmatpush1.bf16.msra.mxu0 0
    %1961 = vmatprep.subr.bf16.mxu0 0
    %1962 = vmatpush1.bf16.msra.mxu0 0
    %1963 = vmatprep.subr.bf16.mxu0 0
    %1964 = vmatpush1.bf16.msra.mxu0 0
    %1965 = vmatprep.subr.bf16.mxu0 0
    %1966 = vmatpush1.bf16.msra.mxu0 0
    %1967 = vmatprep.mubr.bf16.mxu0 0
    %1968 = vmatmul.mubr.bf16.gmra.mrb[0].mxu0 %v1933
    %v1969 = vpop.f32.mrb[0].mxu0
    %v1970 = vadd.f32 %v1919, %v1969
    %v1971 = vpop.f32.mrb[0].mxu0
    %v1972 = vpop.f32.mrb[0].mxu0
    %v1973 = vpop.f32.mrb[0].mxu0
    %1974 = vdwg.mxu0
    %1975 = vmax.xlane.f32.xlu0 %v1970
    %v1976 = vpop.xlane.xlu0 %1975
    %v1977 = vsub.f32 %v1970, %v1976
    %v1978 = vmul.f32 %v1977, 1.442695
    %v1979 = vpow.pop %v1978
    %1980 = vadd.xlane.f32.xlu0 %v1979
    %v1981 = vpop.xlane.xlu0 %1980
    %v1982 = vrcp.pop %v1981
    %v1983 = vmul.f32 %v1979, %v1982
    %1985 = vset.pattern.permute.xlu0 0
    %1986 = vperm.xlu0 %1985, %v1777
    %v1987 = vpop.permute.xlu0 %1986
    %v1989 = vmul.f32 %v1987, %v1983
    %v1990 = vsub.f32 1.0, %v1777
    %v1992 = vcombine.high %v1990, %v1990
    %v1994 = vunpack.c.l.s4 1966171168
    %v1995 = vunpack.c.0.s8 %v1994
    %v1996 = vlaneseq
    %v1997 = vshrl.u32 %v1996, 7
    %v1998 = vsub.s32 %v1995, %v1997
    %v1999 = vrot.slane %v1990, %v1998
    %v2001 = vunpack.c.l.s4 1966171168
    %v2002 = vunpack.c.0.s8 %v2001
    %v2003 = vlaneseq
    %v2004 = vshrl.u32 %v2003, 7
    %v2005 = vsub.s32 %v2002, %v2004
    %v2006 = vrot.slane %v1992, %v2005
    %v2007 = vcombine.high %v1999, %v1999
    %v2008 = vcombine.high %v2006, %v2006
    %v2010 = vunpack.c.l.s4 1966171168
    %v2011 = vunpack.c.0.s8 %v2010
    %v2012 = vlaneseq
    %v2013 = vshrl.u32 %v2012, 7
    %v2014 = vsub.s32 %v2011, %v2013
    %v2015 = vrot.slane %v1999, %v2014
    %v2017 = vunpack.c.l.s4 1966171168
    %v2018 = vunpack.c.0.s8 %v2017
    %v2019 = vlaneseq
    %v2020 = vshrl.u32 %v2019, 7
    %v2021 = vsub.s32 %v2018, %v2020
    %v2022 = vrot.slane %v2006, %v2021
    %v2024 = vunpack.c.l.s4 1966171168
    %v2025 = vunpack.c.0.s8 %v2024
    %v2026 = vlaneseq
    %v2027 = vshrl.u32 %v2026, 7
    %v2028 = vsub.s32 %v2025, %v2027
    %v2029 = vrot.slane %v2007, %v2028
    %v2031 = vunpack.c.l.s4 1966171168
    %v2032 = vunpack.c.0.s8 %v2031
    %v2033 = vlaneseq
    %v2034 = vshrl.u32 %v2033, 7
    %v2035 = vsub.s32 %v2032, %v2034
    %v2036 = vrot.slane %v2008, %v2035
    %v2037 = vcombine.high %v2015, %v2015
    %v2038 = vcombine.high %v2022, %v2022
    %v2039 = vcombine.high %v2029, %v2029
    %v2040 = vcombine.high %v2036, %v2036
    %v2041 = vlaneseq
    %v2042 = vshrl.u32 %v2041, 7
    %v2043 = vsub.s32 0, %v2042
    %v2044 = vrot.slane %v2015, %v2043
    %v2045 = vlaneseq
    %v2046 = vshrl.u32 %v2045, 7
    %v2047 = vsub.s32 0, %v2046
    %v2048 = vrot.slane %v2029, %v2047
    %v2049 = vlaneseq
    %v2050 = vshrl.u32 %v2049, 7
    %v2051 = vsub.s32 0, %v2050
    %v2052 = vrot.slane %v2037, %v2051
    %v2053 = vlaneseq
    %v2054 = vshrl.u32 %v2053, 7
    %v2055 = vsub.s32 0, %v2054
    %v2056 = vrot.slane %v2039, %v2055
    %v2057 = vlaneseq
    %v2058 = vshrl.u32 %v2057, 7
    %v2059 = vsub.s32 0, %v2058
    %v2060 = vrot.slane %v2022, %v2059
    %v2061 = vlaneseq
    %v2062 = vshrl.u32 %v2061, 7
    %v2063 = vsub.s32 0, %v2062
    %v2064 = vrot.slane %v2036, %v2063
    %v2065 = vlaneseq
    %v2066 = vshrl.u32 %v2065, 7
    %v2067 = vsub.s32 0, %v2066
    %v2068 = vrot.slane %v2038, %v2067
    %v2069 = vlaneseq
    %v2070 = vshrl.u32 %v2069, 7
    %v2071 = vsub.s32 0, %v2070
    %v2072 = vrot.slane %v2040, %v2071
    %v2081 = vmul.f32 %v2044, %v1264
    %v2082 = vmul.f32 %v2048, %v1266
    %v2083 = vmul.f32 %v2052, %v1268
    %v2084 = vmul.f32 %v2056, %v1270
    %v2085 = vmul.f32 %v2060, %v1272
    %v2086 = vmul.f32 %v2064, %v1274
    %v2087 = vmul.f32 %v2068, %v1276
    %v2088 = vmul.f32 %v2072, %v1278
    %v2089 = vlaneseq
    %v2090 = vshrl.u32 %v2089, 7
    %v2091 = vsub.s32 0, %v2090
    %v2092 = vrot.slane %v50, %v2091
    %2094 = vbcast.lane.b32.xlu0 %v2092, 256
    %v2095 = vpop.permute.xlu0 %2094
    %v2096 = vlaneseq
    %v2097 = vshrl.u32 %v2096, 7
    %v2098 = vsub.s32 1, %v2097
    %v2099 = vrot.slane %v50, %v2098
    %2101 = vbcast.lane.b32.xlu0 %v2099, 256
    %v2102 = vpop.permute.xlu0 %2101
    %v2103 = vlaneseq
    %v2104 = vshrl.u32 %v2103, 7
    %v2105 = vsub.s32 2, %v2104
    %v2106 = vrot.slane %v50, %v2105
    %2108 = vbcast.lane.b32.xlu0 %v2106, 256
    %v2109 = vpop.permute.xlu0 %2108
    %v2110 = vlaneseq
    %v2111 = vshrl.u32 %v2110, 7
    %v2112 = vsub.s32 3, %v2111
    %v2113 = vrot.slane %v50, %v2112
    %2115 = vbcast.lane.b32.xlu0 %v2113, 256
    %v2116 = vpop.permute.xlu0 %2115
    %v2117 = vlaneseq
    %v2118 = vshrl.u32 %v2117, 7
    %v2119 = vsub.s32 4, %v2118
    %v2120 = vrot.slane %v50, %v2119
    %2122 = vbcast.lane.b32.xlu0 %v2120, 256
    %v2123 = vpop.permute.xlu0 %2122
    %v2124 = vlaneseq
    %v2125 = vshrl.u32 %v2124, 7
    %v2126 = vsub.s32 5, %v2125
    %v2127 = vrot.slane %v50, %v2126
    %2129 = vbcast.lane.b32.xlu0 %v2127, 256
    %v2130 = vpop.permute.xlu0 %2129
    %v2131 = vlaneseq
    %v2132 = vshrl.u32 %v2131, 7
    %v2133 = vsub.s32 6, %v2132
    %v2134 = vrot.slane %v50, %v2133
    %2136 = vbcast.lane.b32.xlu0 %v2134, 256
    %v2137 = vpop.permute.xlu0 %2136
    %v2138 = vlaneseq
    %v2139 = vshrl.u32 %v2138, 7
    %v2140 = vsub.s32 7, %v2139
    %v2141 = vrot.slane %v50, %v2140
    %2143 = vbcast.lane.b32.xlu0 %v2141, 256
    %v2144 = vpop.permute.xlu0 %2143
    %vm2145 = vcmp.eq.s32.totalorder %v1440, %v2095
    %vm2146 = vcmp.eq.s32.totalorder %v1440, %v2102
    %vm2147 = vcmp.eq.s32.totalorder %v1440, %v2109
    %vm2148 = vcmp.eq.s32.totalorder %v1440, %v2116
    %vm2149 = vcmp.eq.s32.totalorder %v1440, %v2123
    %vm2150 = vcmp.eq.s32.totalorder %v1440, %v2130
    %vm2151 = vcmp.eq.s32.totalorder %v1440, %v2137
    %vm2152 = vcmp.eq.s32.totalorder %v1440, %v2144
    %v2153 = vsel %vm2145, 1, 0
    %v2154 = vsel %vm2146, 1, 0
    %v2155 = vsel %vm2147, 1, 0
    %v2156 = vsel %vm2148, 1, 0
    %v2157 = vsel %vm2149, 1, 0
    %v2158 = vsel %vm2150, 1, 0
    %v2159 = vsel %vm2151, 1, 0
    %v2160 = vsel %vm2152, 1, 0
    %v2161 = vcvt.s32.f32 %v2153
    %v2162 = vcvt.s32.f32 %v2154
    %v2163 = vcvt.s32.f32 %v2155
    %v2164 = vcvt.s32.f32 %v2156
    %v2165 = vcvt.s32.f32 %v2157
    %v2166 = vcvt.s32.f32 %v2158
    %v2167 = vcvt.s32.f32 %v2159
    %v2168 = vcvt.s32.f32 %v2160
    %2170 = vset.pattern.permute.xlu0 0
    %2171 = vperm.xlu0 %2170, %v2081
    %v2172 = vpop.permute.xlu0 %2171
    %2175 = vset.pattern.permute.xlu0 0
    %2176 = vperm.xlu0 %2175, %v2082
    %v2177 = vpop.permute.xlu0 %2176
    %2180 = vset.pattern.permute.xlu0 0
    %2181 = vperm.xlu0 %2180, %v2083
    %v2182 = vpop.permute.xlu0 %2181
    %2185 = vset.pattern.permute.xlu0 0
    %2186 = vperm.xlu0 %2185, %v2084
    %v2187 = vpop.permute.xlu0 %2186
    %2190 = vset.pattern.permute.xlu0 0
    %2191 = vperm.xlu0 %2190, %v2085
    %v2192 = vpop.permute.xlu0 %2191
    %2195 = vset.pattern.permute.xlu0 0
    %2196 = vperm.xlu0 %2195, %v2086
    %v2197 = vpop.permute.xlu0 %2196
    %2200 = vset.pattern.permute.xlu0 0
    %2201 = vperm.xlu0 %2200, %v2087
    %v2202 = vpop.permute.xlu0 %2201
    %2205 = vset.pattern.permute.xlu0 0
    %2206 = vperm.xlu0 %2205, %v2088
    %v2207 = vpop.permute.xlu0 %2206
    %v2209 = vmul.f32 %v2172, %v2161
    %v2210 = vmul.f32 %v2177, %v2162
    %v2211 = vmul.f32 %v2182, %v2163
    %v2212 = vmul.f32 %v2187, %v2164
    %v2213 = vmul.f32 %v2192, %v2165
    %v2214 = vmul.f32 %v2197, %v2166
    %v2215 = vmul.f32 %v2202, %v2167
    %v2216 = vmul.f32 %v2207, %v2168
    %v2217 = vrot.slane %v2209, 4
    %v2218 = vadd.f32 %v2209, %v2217
    %v2219 = vrot.slane %v2218, 2
    %v2220 = vadd.f32 %v2218, %v2219
    %v2221 = vrot.slane %v2220, 1
    %v2222 = vadd.f32 %v2220, %v2221
    %v2223 = vrot.slane %v2210, 4
    %v2224 = vadd.f32 %v2210, %v2223
    %v2225 = vrot.slane %v2224, 2
    %v2226 = vadd.f32 %v2224, %v2225
    %v2227 = vrot.slane %v2226, 1
    %v2228 = vadd.f32 %v2226, %v2227
    %v2229 = vrot.slane %v2211, 4
    %v2230 = vadd.f32 %v2211, %v2229
    %v2231 = vrot.slane %v2230, 2
    %v2232 = vadd.f32 %v2230, %v2231
    %v2233 = vrot.slane %v2232, 1
    %v2234 = vadd.f32 %v2232, %v2233
    %v2235 = vrot.slane %v2212, 4
    %v2236 = vadd.f32 %v2212, %v2235
    %v2237 = vrot.slane %v2236, 2
    %v2238 = vadd.f32 %v2236, %v2237
    %v2239 = vrot.slane %v2238, 1
    %v2240 = vadd.f32 %v2238, %v2239
    %v2241 = vrot.slane %v2213, 4
    %v2242 = vadd.f32 %v2213, %v2241
    %v2243 = vrot.slane %v2242, 2
    %v2244 = vadd.f32 %v2242, %v2243
    %v2245 = vrot.slane %v2244, 1
    %v2246 = vadd.f32 %v2244, %v2245
    %v2247 = vrot.slane %v2214, 4
    %v2248 = vadd.f32 %v2214, %v2247
    %v2249 = vrot.slane %v2248, 2
    %v2250 = vadd.f32 %v2248, %v2249
    %v2251 = vrot.slane %v2250, 1
    %v2252 = vadd.f32 %v2250, %v2251
    %v2253 = vrot.slane %v2215, 4
    %v2254 = vadd.f32 %v2215, %v2253
    %v2255 = vrot.slane %v2254, 2
    %v2256 = vadd.f32 %v2254, %v2255
    %v2257 = vrot.slane %v2256, 1
    %v2258 = vadd.f32 %v2256, %v2257
    %v2259 = vrot.slane %v2216, 4
    %v2260 = vadd.f32 %v2216, %v2259
    %v2261 = vrot.slane %v2260, 2
    %v2262 = vadd.f32 %v2260, %v2261
    %v2263 = vrot.slane %v2262, 1
    %v2264 = vadd.f32 %v2262, %v2263
    %v2266 = vrot.slane %v1989, 1
    %v2267 = vrot.slane %v1989, 2
    %v2268 = vrot.slane %v1989, 3
    %v2269 = vrot.slane %v1989, 4
    %v2270 = vrot.slane %v1989, 5
    %v2271 = vrot.slane %v1989, 6
    %v2272 = vrot.slane %v1989, 7
    %v2281 = vadd.f32 %v2222, %v1989
    %v2282 = vadd.f32 %v2228, %v2266
    %v2283 = vadd.f32 %v2234, %v2267
    %v2284 = vadd.f32 %v2240, %v2268
    %v2285 = vadd.f32 %v2246, %v2269
    %v2286 = vadd.f32 %v2252, %v2270
    %v2287 = vadd.f32 %v2258, %v2271
    %v2288 = vadd.f32 %v2264, %v2272
    %v2297 = vrot.slane %v2282, 7
    %v2298 = vsel %vm1474, %v2297, %v2281
    %v2299 = vrot.slane %v2283, 6
    %v2300 = vsel %vm1476, %v2299, %v2298
    %v2301 = vrot.slane %v2284, 5
    %v2302 = vsel %vm1478, %v2301, %v2300
    %v2303 = vrot.slane %v2285, 4
    %v2304 = vsel %vm1480, %v2303, %v2302
    %v2305 = vrot.slane %v2286, 3
    %v2306 = vsel %vm1482, %v2305, %v2304
    %v2307 = vrot.slane %v2287, 2
    %v2308 = vsel %vm1484, %v2307, %v2306
    %v2309 = vrot.slane %v2288, 1
    %v2310 = vsel %vm1486, %v2309, %v2308
    %2312 = vst [vmem:[#allocation2] sm:$0xff] %v2310
    %2314 = vrot.lane.b32.xlu0 %v364, 32
    %v2315 = vpop.permute.xlu0 %2314
    %v2325 = vsel %vm1474, %v1356, %v1349
    %v2326 = vsel %vm1476, %v1363, %v2325
    %v2327 = vsel %vm1478, %v1370, %v2326
    %v2328 = vsel %vm1480, %v1377, %v2327
    %v2329 = vsel %vm1482, %v1384, %v2328
    %v2330 = vsel %vm1484, %v1391, %v2329
    %v2331 = vsel %vm1486, %v1398, %v2330
    %2332 = vrot.lane.b32.xlu0 %v2331, 64
    %v2333 = vpop.permute.xlu0 %2332
    %v2335 = vsel %vm85, %v2315, %v358
    %v2336 = vsel %vm161, %v2335, %v2333
    %2337 = vst [vmem:[#allocation4] sm:$0xff] %v2336
    %v2338 = vlaneseq
    %v2339 = vshrl.u32 %v2338, 7
    %v2340 = vsub.s32 %v1440, %v2339
    %v2341 = vrot.slane %v1417, %v2340
    %v2342 = vlaneseq
    %v2343 = vshrl.u32 %v2342, 7
    %v2344 = vsub.s32 %v1440, %v2343
    %v2345 = vrot.slane %v1420, %v2344
    %v2346 = vlaneseq
    %v2347 = vshrl.u32 %v2346, 7
    %v2348 = vsub.s32 %v1440, %v2347
    %v2349 = vrot.slane %v1423, %v2348
    %v2350 = vlaneseq
    %v2351 = vshrl.u32 %v2350, 7
    %v2352 = vsub.s32 %v1440, %v2351
    %v2353 = vrot.slane %v1426, %v2352
    %v2354 = vlaneseq
    %v2355 = vshrl.u32 %v2354, 7
    %v2356 = vsub.s32 %v1440, %v2355
    %v2357 = vrot.slane %v1429, %v2356
    %v2358 = vlaneseq
    %v2359 = vshrl.u32 %v2358, 7
    %v2360 = vsub.s32 %v1440, %v2359
    %v2361 = vrot.slane %v1432, %v2360
    %v2362 = vlaneseq
    %v2363 = vshrl.u32 %v2362, 7
    %v2364 = vsub.s32 %v1440, %v2363
    %v2365 = vrot.slane %v1435, %v2364
    %v2366 = vlaneseq
    %v2367 = vshrl.u32 %v2366, 7
    %v2368 = vsub.s32 %v1440, %v2367
    %v2369 = vrot.slane %v1438, %v2368
    %v2370 = vsel %vm1474, %v2345, %v2341
    %v2371 = vsel %vm1476, %v2349, %v2370
    %v2372 = vsel %vm1478, %v2353, %v2371
    %v2373 = vsel %vm1480, %v2357, %v2372
    %v2374 = vsel %vm1482, %v2361, %v2373
    %v2375 = vsel %vm1484, %v2365, %v2374
    %v2376 = vsel %vm1486, %v2369, %v2375
    %2379 = vrot.lane.b32.xlu0 %v1489, 96
    %v2380 = vpop.permute.xlu0 %2379
    %2382 = vrot.lane.b32.xlu0 %v1777, 16
    %v2383 = vpop.permute.xlu0 %2382
    %vm2385 = vcmask 64512
    %v2386 = vsel %vm2385, %v2376, %v2380
    %vm2387 = vcmask 130048
    %v2388 = vsel %vm2387, %v2386, %v2383
    %vm2389 = vcmask 138240
    %v2390 = vsel %vm2389, %v2388, 0.0
    %2391 = vst [vmem:[#allocation6] sm:$0xff] %v2390
    // Predicated region
    $region50: #{tpu_custom_call.1} parent=1 // pred_check
      _
    $region51: #{tpu_custom_call.1} parent=1 // pred_check_branch
      %2393 = sbr.rel (0) target = $region53
    $region52: #{tpu_custom_call.1} parent=1 // pred_region
      %s2395 = ssub.s32 128, 128
      %2396 = vsyncadd [#allocation3], %s2395
      %s2398 = sshll.u32 [#allocation2], 4
      %s2399 = int_to_ptr.vmem [resolvable:$true] %s2398
      %2401 = dma.vmem_to_hbm [thread:$0]  %s2399, 128, %s12, [#allocation3]
    $region53: #{tpu_custom_call.1} parent=1 // pred_fallthru
      _
    // Predicated region
    $region54: #{tpu_custom_call.1} parent=1 // pred_check
      _
    $region55: #{tpu_custom_call.1} parent=1 // pred_check_branch
      %2403 = sbr.rel (0) target = $region57
    $region56: #{tpu_custom_call.1} parent=1 // pred_region
      %s2405 = ssub.s32 128, 128
      %2406 = vsyncadd [#allocation5], %s2405
      %s2408 = sshll.u32 [#allocation4], 4
      %s2409 = int_to_ptr.vmem [resolvable:$true] %s2408
      %2411 = dma.vmem_to_hbm [thread:$0]  %s2409, 128, %s13, [#allocation5]
    $region57: #{tpu_custom_call.1} parent=1 // pred_fallthru
      _
    // Predicated region
    $region58: #{tpu_custom_call.1} parent=1 // pred_check
      _
    $region59: #{tpu_custom_call.1} parent=1 // pred_check_branch
      %2413 = sbr.rel (0) target = $region61
    $region60: #{tpu_custom_call.1} parent=1 // pred_region
      %s2415 = ssub.s32 128, 128
      %2416 = vsyncadd [#allocation5], %s2415
      %s2418 = sshll.u32 [#allocation6], 4
      %s2419 = int_to_ptr.vmem [resolvable:$true] %s2418
      %2421 = dma.vmem_to_hbm [thread:$0]  %s2419, 128, %s14, [#allocation5]
    $region61: #{tpu_custom_call.1} parent=1 // pred_fallthru
      _
    // Predicated region
    $region62: #{tpu_custom_call.1} parent=1 // pred_check
      _
    $region63: #{tpu_custom_call.1} parent=1 // pred_check_branch
      %2423 = sbr.rel (0) target = $region65
    $region64: #{tpu_custom_call.1} parent=1 // pred_region
      %2424 = dma.done [#allocation3], 128
    $region65: #{tpu_custom_call.1} parent=1 // pred_fallthru
      _
    // Predicated region
    $region66: #{tpu_custom_call.1} parent=1 // pred_check
      _
    $region67: #{tpu_custom_call.1} parent=1 // pred_check_branch
      %2426 = sbr.rel (0) target = $region69
    $region68: #{tpu_custom_call.1} parent=1 // pred_region
      %2427 = dma.done [#allocation5], 128
    $region69: #{tpu_custom_call.1} parent=1 // pred_fallthru
      _
    // Predicated region
    $region70: #{tpu_custom_call.1} parent=1 // pred_check
      _
    $region71: #{tpu_custom_call.1} parent=1 // pred_check_branch
      %2429 = sbr.rel (0) target = $region73
    $region72: #{tpu_custom_call.1} parent=1 // pred_region
      %2430 = dma.done [#allocation5], 128
    $region73: #{tpu_custom_call.1} parent=1 // pred_fallthru
      _
    %2431 = vsyncpa [#allocation3], 1
    %2432 = vsyncpa [#allocation5], 1

</llo_original>
